<compile_context>
chip_gen: v5e
topology: v5e:2x2
jax: 0.10.0
libtpu: 0.0.40
codegen_flags: <defaults>
</compile_context>

<pallas_src>
import math
import functools

import jax
import jax.numpy as jnp
from jax.experimental import pallas as pl
from jax.experimental.pallas import tpu as pltpu


# ----------------------------- in-kernel helpers -----------------------------

def _layernorm(h, gamma, beta, eps=1e-5):
    # h: (L, D) f32, gamma/beta: (1, D).  PyTorch LayerNorm: biased variance, eps=1e-5.
    mean = jnp.mean(h, axis=-1, keepdims=True)
    var = jnp.mean((h - mean) ** 2, axis=-1, keepdims=True)
    return (h - mean) * jax.lax.rsqrt(var + eps) * gamma + beta


def _softmax(x):
    # numerically-stable softmax; divide moved to the EUP via approx reciprocal.
    m = jnp.max(x, axis=-1, keepdims=True)
    e = jnp.exp(x - m)
    return e * pl.reciprocal(jnp.sum(e, axis=-1, keepdims=True), approx=True)


# --------------------------------- kernel ------------------------------------

def _icssl_kernel(x_ref, w_in_ref,
                  g1_ref, b1_ref, wq_ref, wk_ref, wv_ref, wo_ref,
                  g2_ref, b2_ref, w1_ref, bf1_ref, w2_ref, bf2_ref,
                  w_out_ref, o_ref, h_ref, *, n_heads, d_head):
    layer = pl.program_id(1)
    n_layers = pl.num_programs(1)
    scale = 1.0 / math.sqrt(d_head)
    bf16 = jnp.bfloat16

    # ---- first layer step: in_proj(x) -> carried hidden state (f32, VMEM scratch) ----
    @pl.when(layer == 0)
    def _():
        x = x_ref[...].astype(bf16)                                   # (L, Din)
        h_ref[...] = jnp.dot(x, w_in_ref[...],
                             preferred_element_type=jnp.float32)      # (L, D) f32

    hid = h_ref[...]                                                  # (L, D) f32

    # ---- LN1 -> multi-head self-attention -> residual ----
    y = _layernorm(hid, g1_ref[...], b1_ref[...]).astype(bf16)        # (L, D) bf16
    att = jnp.zeros_like(hid)                                         # f32 accumulator
    for hh in range(n_heads):                                         # static unroll
        qh = jnp.dot(y, wq_ref[hh], preferred_element_type=jnp.float32)   # (L, dh)
        kh = jnp.dot(y, wk_ref[hh], preferred_element_type=jnp.float32)   # (L, dh)
        vh = jnp.dot(y, wv_ref[hh], preferred_element_type=jnp.float32)   # (L, dh)
        # scores = qh @ kh.T  (contract last dims of both -> no transpose relayout)
        s = jax.lax.dot_general(qh.astype(bf16), kh.astype(bf16),
                                (((1,), (1,)), ((), ())),
                                preferred_element_type=jnp.float32) * scale  # (L, L)
        a = _softmax(s).astype(bf16)
        ctx = jnp.dot(a, vh.astype(bf16),
                      preferred_element_type=jnp.float32)             # (L, dh)
        # per-head slice of the output projection: ctx @ Wo == sum_h ctx_h @ Wo_h
        att = att + jnp.dot(ctx.astype(bf16), wo_ref[hh],
                            preferred_element_type=jnp.float32)       # (L, D)
    hid = hid + att

    # ---- LN2 -> FFN (Linear -> Softmax(dim=-1) -> Linear) -> residual ----
    y2 = _layernorm(hid, g2_ref[...], b2_ref[...]).astype(bf16)
    u = jnp.dot(y2, w1_ref[...], preferred_element_type=jnp.float32) \
        + bf1_ref[...].astype(jnp.float32)                            # (L, F)
    u = _softmax(u).astype(bf16)
    z = jnp.dot(u, w2_ref[...], preferred_element_type=jnp.float32) \
        + bf2_ref[...].astype(jnp.float32)                            # (L, D)
    hid = hid + z

    h_ref[...] = hid                                                  # carry to next layer

    # ---- last layer step: out_proj ----
    @pl.when(layer == n_layers - 1)
    def _():
        o_ref[...] = jnp.dot(hid.astype(bf16), w_out_ref[...],
                             preferred_element_type=jnp.float32)      # (L, Din)


# ------------------------------- wrapper --------------------------------------

def icssl_transformer(x, params, *, n_heads):
    B, L, Din = x.shape
    n_layers, D, _ = params["wq"].shape
    F = params["w1"].shape[-1]
    assert D % n_heads == 0
    d_head = D // n_heads
    wdt = jnp.bfloat16

    # Weights at rest in bf16; q/k/v/o pre-split per head so the kernel never
    # lane-slices activations or concatenates heads.
    def split_cols(w):  # (NL, D, D) -> (NL, H, D, dh), columns grouped by head
        return w.reshape(n_layers, D, n_heads, d_head).transpose(0, 2, 1, 3)

    w_in = params["w_in"].astype(wdt)
    w_out = params["w_out"].astype(wdt)
    wq = split_cols(params["wq"]).astype(wdt)
    wk = split_cols(params["wk"]).astype(wdt)
    wv = split_cols(params["wv"]).astype(wdt)
    wo = params["wo"].reshape(n_layers, n_heads, d_head, D).astype(wdt)  # rows by head
    g1 = params["g1"].reshape(n_layers, 1, D).astype(wdt)
    b1 = params["b1"].reshape(n_layers, 1, D).astype(wdt)
    g2 = params["g2"].reshape(n_layers, 1, D).astype(wdt)
    b2 = params["b2"].reshape(n_layers, 1, D).astype(wdt)
    w1 = params["w1"].astype(wdt)
    bf1 = params["bf1"].reshape(n_layers, 1, F).astype(wdt)
    w2 = params["w2"].astype(wdt)
    bf2 = params["bf2"].reshape(n_layers, 1, D).astype(wdt)

    def per_layer(shape):  # leading layer dim squeezed; one layer's slab per grid step
        nd = len(shape)
        return pl.BlockSpec((None,) + tuple(shape),
                            lambda b, l, _nd=nd: (l,) + (0,) * _nd)

    def const(shape):      # whole array, fetched once (constant block index)
        nd = len(shape)
        return pl.BlockSpec(tuple(shape), lambda b, l, _nd=nd: (0,) * _nd)

    in_specs = [
        pl.BlockSpec((None, L, Din), lambda b, l: (b, 0, 0)),   # x
        const((Din, D)),                                        # w_in
        per_layer((1, D)), per_layer((1, D)),                   # g1, b1
        per_layer((n_heads, D, d_head)),                        # wq
        per_layer((n_heads, D, d_head)),                        # wk
        per_layer((n_heads, D, d_head)),                        # wv
        per_layer((n_heads, d_head, D)),                        # wo
        per_layer((1, D)), per_layer((1, D)),                   # g2, b2
        per_layer((D, F)), per_layer((1, F)),                   # w1, bf1
        per_layer((F, D)), per_layer((1, D)),                   # w2, bf2
        const((D, Din)),                                        # w_out
    ]
    out_specs = pl.BlockSpec((None, L, Din), lambda b, l: (b, 0, 0))

    # Explicit VMEM budget: one layer's bf16 weights double-buffered + constants
    # + f32 activation working set + carried hidden state, with generous headroom.
    per_layer_w = (4 * D * D + 2 * D * F + 2 * F + 6 * D) * 2        # bf16 bytes
    const_w = 2 * Din * D * 2
    act = (8 * L * D + 2 * L * F + 2 * L * L) * 4                    # rough f32 working set
    io = 4 * L * Din * 4
    needed = 2 * per_layer_w + 2 * const_w + act + io + L * D * 4
    vmem_limit = int(min(max(4 * needed, 16 * 1024 * 1024), 48 * 1024 * 1024))

    # Advisory cost estimate for XLA scheduling around the custom call.
    mm_flops = 2 * B * L * Din * D * 2                               # in_proj + out_proj
    mm_flops += 2 * B * n_layers * L * (4 * D * D + 2 * D * F + 2 * L * D)
    transcendentals = B * n_layers * (n_heads * L * L + L * F + 2 * L)
    weight_bytes = sum(int(w.size) * 2 for w in
                       (w_in, w_out, wq, wk, wv, wo, g1, b1, g2, b2, w1, bf1, w2, bf2))
    bytes_accessed = int(2 * B * L * Din * 4 + B * weight_bytes)

    kernel = functools.partial(_icssl_kernel, n_heads=n_heads, d_head=d_head)

    return pl.pallas_call(
        kernel,
        out_shape=jax.ShapeDtypeStruct((B, L, Din), jnp.float32),
        grid=(B, n_layers),
        in_specs=in_specs,
        out_specs=out_specs,
        scratch_shapes=[pltpu.VMEM((L, D), jnp.float32)],            # carried hidden state
        compiler_params=pltpu.CompilerParams(
            dimension_semantics=("parallel", "arbitrary"),
            vmem_limit_bytes=vmem_limit),
        cost_estimate=pl.CostEstimate(
            flops=int(mm_flops),
            transcendentals=int(transcendentals),
            bytes_accessed=bytes_accessed),
    )(x, w_in, g1, b1, wq, wk, wv, wo, g2, b2, w1, bf1, w2, bf2, w_out)


# --------------------------- pure-JAX reference --------------------------------

def _reference(x, p, *, n_heads):
    def ln(h, g, b, eps=1e-5):
        m = jnp.mean(h, axis=-1, keepdims=True)
        v = jnp.mean((h - m) ** 2, axis=-1, keepdims=True)
        return (h - m) / jnp.sqrt(v + eps) * g + b

    B, L, _ = x.shape
    n_layers, D, _ = p["wq"].shape
    dh = D // n_heads
    h = x @ p["w_in"]
    for l in range(n_layers):
        y = ln(h, p["g1"][l], p["b1"][l])
        q = y @ p["wq"][l]
        k = y @ p["wk"][l]
        v = y @ p["wv"][l]
        split = lambda t: t.reshape(B, L, n_heads, dh).transpose(0, 2, 1, 3)
        qh, kh, vh = split(q), split(k), split(v)
        s = (qh @ kh.transpose(0, 1, 3, 2)) / math.sqrt(dh)
        a = jax.nn.softmax(s, axis=-1)
        ctx = (a @ vh).transpose(0, 2, 1, 3).reshape(B, L, D)
        h = h + ctx @ p["wo"][l]
        y2 = ln(h, p["g2"][l], p["b2"][l])
        u = jax.nn.softmax(y2 @ p["w1"][l] + p["bf1"][l], axis=-1)
        h = h + u @ p["w2"][l] + p["bf2"][l]
    return h @ p["w_out"]


# --------------------------------- main ----------------------------------------

if __name__ == "__main__":
    B, L, Din = 2, 8, 16
    D, H, NL, FF = 32, 4, 2, 4
    F = FF * D

    key = jax.random.PRNGKey(0)
    ks = jax.random.split(key, 12)
    norm = lambda k, shape, s=0.1: (s * jax.random.normal(k, shape)).astype(jnp.float32)

    params = {
        "w_in":  norm(ks[0], (Din, D)),
        "g1":    jnp.ones((NL, D), jnp.float32),
        "b1":    jnp.zeros((NL, D), jnp.float32),
        "wq":    norm(ks[1], (NL, D, D)),
        "wk":    norm(ks[2], (NL, D, D)),
        "wv":    norm(ks[3], (NL, D, D)),
        "wo":    norm(ks[4], (NL, D, D)),
        "g2":    jnp.ones((NL, D), jnp.float32),
        "b2":    jnp.zeros((NL, D), jnp.float32),
        "w1":    norm(ks[5], (NL, D, F)),
        "bf1":   norm(ks[6], (NL, F), 0.01),
        "w2":    norm(ks[7], (NL, F, D)),
        "bf2":   norm(ks[8], (NL, D), 0.01),
        "w_out": norm(ks[9], (D, Din)),
    }

    x = jax.random.normal(ks[10], (B, L, Din), dtype=jnp.float32)

    out = icssl_transformer(x, params, n_heads=H)
    out = jax.block_until_ready(out)

    ref = _reference(x, params, n_heads=H)
    if not jnp.allclose(out, ref, atol=2e-2, rtol=2e-2):
        err = float(jnp.max(jnp.abs(out - ref)))
        raise AssertionError(f"Pallas kernel output mismatch vs JAX reference (max abs err {err:.4e})")

    print("KERNEL_OK")
</pallas_src>

<mosaic_0001>
module attributes {stable_mosaic.version = 11 : i64} {
  func.func @_icssl_kernel(%arg0: i32, %arg1: i32, %arg2: memref<1x8x16xf32, #tpu.memory_space<vmem>>, %arg3: memref<16x32xbf16, #tpu.memory_space<vmem>>, %arg4: memref<1x1x32xbf16, #tpu.memory_space<vmem>>, %arg5: memref<1x1x32xbf16, #tpu.memory_space<vmem>>, %arg6: memref<1x4x32x8xbf16, #tpu.memory_space<vmem>>, %arg7: memref<1x4x32x8xbf16, #tpu.memory_space<vmem>>, %arg8: memref<1x4x32x8xbf16, #tpu.memory_space<vmem>>, %arg9: memref<1x4x8x32xbf16, #tpu.memory_space<vmem>>, %arg10: memref<1x1x32xbf16, #tpu.memory_space<vmem>>, %arg11: memref<1x1x32xbf16, #tpu.memory_space<vmem>>, %arg12: memref<1x32x128xbf16, #tpu.memory_space<vmem>>, %arg13: memref<1x1x128xbf16, #tpu.memory_space<vmem>>, %arg14: memref<1x128x32xbf16, #tpu.memory_space<vmem>>, %arg15: memref<1x1x32xbf16, #tpu.memory_space<vmem>>, %arg16: memref<32x16xbf16, #tpu.memory_space<vmem>>, %arg17: memref<1x8x16xf32, #tpu.memory_space<vmem>>, %arg18: memref<8x32xf32, #tpu.memory_space<vmem>>) attributes {dimension_semantics = [#tpu.dimension_semantics<parallel>, #tpu.dimension_semantics<arbitrary>], iteration_bounds = array<i64: 2, 2>, scalar_prefetch = 0 : i64, scratch_operands = 1 : i64, tpu.core_type = #tpu.core_type<tc>, window_params = [{transform_indices = @transform_0, window_bounds = array<i64: 1, 8, 16>}, {pipeline_mode = #tpu.pipeline_mode<synchronous>, transform_indices = @transform_1, window_bounds = array<i64: 16, 32>}, {transform_indices = @transform_2, window_bounds = array<i64: 1, 1, 32>}, {transform_indices = @transform_3, window_bounds = array<i64: 1, 1, 32>}, {transform_indices = @transform_4, window_bounds = array<i64: 1, 4, 32, 8>}, {transform_indices = @transform_5, window_bounds = array<i64: 1, 4, 32, 8>}, {transform_indices = @transform_6, window_bounds = array<i64: 1, 4, 32, 8>}, {transform_indices = @transform_7, window_bounds = array<i64: 1, 4, 8, 32>}, {transform_indices = @transform_8, window_bounds = array<i64: 1, 1, 32>}, {transform_indices = @transform_9, window_bounds = array<i64: 1, 1, 32>}, {transform_indices = @transform_10, window_bounds = array<i64: 1, 32, 128>}, {transform_indices = @transform_11, window_bounds = array<i64: 1, 1, 128>}, {transform_indices = @transform_12, window_bounds = array<i64: 1, 128, 32>}, {transform_indices = @transform_13, window_bounds = array<i64: 1, 1, 32>}, {pipeline_mode = #tpu.pipeline_mode<synchronous>, transform_indices = @transform_14, window_bounds = array<i64: 32, 16>}, {transform_indices = @transform_15, window_bounds = array<i64: 1, 8, 16>}]} {
    %c0_i32 = arith.constant 0 : i32
    %0 = arith.cmpi eq, %arg1, %c0_i32 : i32
    %1 = arith.extui %0 : i1 to i32
    %c0_i32_0 = arith.constant 0 : i32
    %2 = arith.cmpi ne, %1, %c0_i32_0 : i32
    scf.if %2 {
      %c0_140 = arith.constant 0 : index
      %c0_141 = arith.constant 0 : index
      %c0_142 = arith.constant 0 : index
      %224 = vector.load %arg2[%c0_140, %c0_141, %c0_142] : memref<1x8x16xf32, #tpu.memory_space<vmem>>, vector<1x8x16xf32>
      %225 = vector.shape_cast %224 : vector<1x8x16xf32> to vector<8x16xf32>
      %226 = arith.truncf %225 : vector<8x16xf32> to vector<8x16xbf16>
      %c0_143 = arith.constant 0 : index
      %c0_144 = arith.constant 0 : index
      %227 = vector.load %arg3[%c0_143, %c0_144] : memref<16x32xbf16, #tpu.memory_space<vmem>>, vector<16x32xbf16>
      %cst_145 = arith.constant dense<0.000000e+00> : vector<8x32xf32>
      %228 = tpu.matmul %226, %227, %cst_145 {dimension_numbers = #tpu.dot_dimension_numbers<[1], [0], [0], [1], [0, 0, 1, 1], [], []>} : vector<8x16xbf16>, vector<16x32xbf16>, vector<8x32xf32> -> vector<8x32xf32>
      %c0_146 = arith.constant 0 : index
      %c0_147 = arith.constant 0 : index
      %229 = vector.load %arg18[%c0_146, %c0_147] : memref<8x32xf32, #tpu.memory_space<vmem>>, vector<8x32xf32>
      tpu.vector_store %arg18[%c0_146, %c0_147], %228 {strides = array<i32>} : memref<8x32xf32, #tpu.memory_space<vmem>>, vector<8x32xf32>,
    } else {
    }
    %c0 = arith.constant 0 : index
    %c0_1 = arith.constant 0 : index
    %3 = vector.load %arg18[%c0, %c0_1] : memref<8x32xf32, #tpu.memory_space<vmem>>, vector<8x32xf32>
    %c0_2 = arith.constant 0 : index
    %c0_3 = arith.constant 0 : index
    %c0_4 = arith.constant 0 : index
    %4 = vector.load %arg4[%c0_2, %c0_3, %c0_4] : memref<1x1x32xbf16, #tpu.memory_space<vmem>>, vector<1x1x32xbf16>
    %5 = vector.shape_cast %4 : vector<1x1x32xbf16> to vector<1x32xbf16>
    %c0_5 = arith.constant 0 : index
    %c0_6 = arith.constant 0 : index
    %c0_7 = arith.constant 0 : index
    %6 = vector.load %arg5[%c0_5, %c0_6, %c0_7] : memref<1x1x32xbf16, #tpu.memory_space<vmem>>, vector<1x1x32xbf16>
    %7 = vector.shape_cast %6 : vector<1x1x32xbf16> to vector<1x32xbf16>
    %cst = arith.constant dense<0.000000e+00> : vector<8xf32>
    %8 = vector.multi_reduction <add>, %3, %cst [1] : vector<8x32xf32> to vector<8xf32>
    %9 = vector.shape_cast %8 : vector<8xf32> to vector<8x1xf32>
    %cst_8 = arith.constant 3.200000e+01 : f32
    %10 = vector.broadcast %cst_8 : f32 to vector<8x1xf32>
    %11 = arith.divf %9, %10 : vector<8x1xf32>
    %12 = vector.broadcast %11 : vector<8x1xf32> to vector<8x32xf32>
    %13 = arith.subf %3, %12 : vector<8x32xf32>
    %14 = arith.mulf %13, %13 : vector<8x32xf32>
    %cst_9 = arith.constant dense<0.000000e+00> : vector<8xf32>
    %15 = vector.multi_reduction <add>, %14, %cst_9 [1] : vector<8x32xf32> to vector<8xf32>
    %16 = vector.shape_cast %15 : vector<8xf32> to vector<8x1xf32>
    %cst_10 = arith.constant 3.200000e+01 : f32
    %17 = vector.broadcast %cst_10 : f32 to vector<8x1xf32>
    %18 = arith.divf %16, %17 : vector<8x1xf32>
    %19 = vector.broadcast %11 : vector<8x1xf32> to vector<8x32xf32>
    %20 = arith.subf %3, %19 : vector<8x32xf32>
    %cst_11 = arith.constant 9.99999974E-6 : f32
    %21 = vector.broadcast %cst_11 : f32 to vector<8x1xf32>
    %22 = arith.addf %18, %21 : vector<8x1xf32>
    %23 = math.rsqrt %22 : vector<8x1xf32>
    %24 = vector.broadcast %23 : vector<8x1xf32> to vector<8x32xf32>
    %25 = arith.mulf %20, %24 : vector<8x32xf32>
    %26 = arith.extf %5 : vector<1x32xbf16> to vector<1x32xf32>
    %27 = vector.broadcast %26 : vector<1x32xf32> to vector<8x32xf32>
    %28 = arith.mulf %25, %27 : vector<8x32xf32>
    %29 = arith.extf %7 : vector<1x32xbf16> to vector<1x32xf32>
    %30 = vector.broadcast %29 : vector<1x32xf32> to vector<8x32xf32>
    %31 = arith.addf %28, %30 : vector<8x32xf32>
    %32 = arith.truncf %31 : vector<8x32xf32> to vector<8x32xbf16>
    %cst_12 = arith.constant 0.000000e+00 : f32
    %33 = vector.broadcast %cst_12 : f32 to vector<8x32xf32>
    %c0_13 = arith.constant 0 : index
    %c0_14 = arith.constant 0 : index
    %c0_15 = arith.constant 0 : index
    %c0_16 = arith.constant 0 : index
    %34 = vector.load %arg6[%c0_13, %c0_14, %c0_15, %c0_16] : memref<1x4x32x8xbf16, #tpu.memory_space<vmem>>, vector<1x1x32x8xbf16>
    %35 = vector.shape_cast %34 : vector<1x1x32x8xbf16> to vector<32x8xbf16>
    %cst_17 = arith.constant dense<0.000000e+00> : vector<8x8xf32>
    %36 = tpu.matmul %32, %35, %cst_17 {dimension_numbers = #tpu.dot_dimension_numbers<[1], [0], [0], [1], [0, 0, 1, 1], [], []>} : vector<8x32xbf16>, vector<32x8xbf16>, vector<8x8xf32> -> vector<8x8xf32>
    %c0_18 = arith.constant 0 : index
    %c0_19 = arith.constant 0 : index
    %c0_20 = arith.constant 0 : index
    %c0_21 = arith.constant 0 : index
    %37 = vector.load %arg7[%c0_18, %c0_19, %c0_20, %c0_21] : memref<1x4x32x8xbf16, #tpu.memory_space<vmem>>, vector<1x1x32x8xbf16>
    %38 = vector.shape_cast %37 : vector<1x1x32x8xbf16> to vector<32x8xbf16>
    %cst_22 = arith.constant dense<0.000000e+00> : vector<8x8xf32>
    %39 = tpu.matmul %32, %38, %cst_22 {dimension_numbers = #tpu.dot_dimension_numbers<[1], [0], [0], [1], [0, 0, 1, 1], [], []>} : vector<8x32xbf16>, vector<32x8xbf16>, vector<8x8xf32> -> vector<8x8xf32>
    %c0_23 = arith.constant 0 : index
    %c0_24 = arith.constant 0 : index
    %c0_25 = arith.constant 0 : index
    %c0_26 = arith.constant 0 : index
    %40 = vector.load %arg8[%c0_23, %c0_24, %c0_25, %c0_26] : memref<1x4x32x8xbf16, #tpu.memory_space<vmem>>, vector<1x1x32x8xbf16>
    %41 = vector.shape_cast %40 : vector<1x1x32x8xbf16> to vector<32x8xbf16>
    %cst_27 = arith.constant dense<0.000000e+00> : vector<8x8xf32>
    %42 = tpu.matmul %32, %41, %cst_27 {dimension_numbers = #tpu.dot_dimension_numbers<[1], [0], [0], [1], [0, 0, 1, 1], [], []>} : vector<8x32xbf16>, vector<32x8xbf16>, vector<8x8xf32> -> vector<8x8xf32>
    %43 = arith.truncf %36 : vector<8x8xf32> to vector<8x8xbf16>
    %44 = arith.truncf %39 : vector<8x8xf32> to vector<8x8xbf16>
    %cst_28 = arith.constant dense<0.000000e+00> : vector<8x8xf32>
    %45 = tpu.matmul %43, %44, %cst_28 {dimension_numbers = #tpu.dot_dimension_numbers<[1], [1], [0], [0], [0, 0, 1, 0], [], []>} : vector<8x8xbf16>, vector<8x8xbf16>, vector<8x8xf32> -> vector<8x8xf32>
    %cst_29 = arith.constant 0.353553385 : f32
    %46 = vector.broadcast %cst_29 : f32 to vector<8x8xf32>
    %47 = arith.mulf %45, %46 : vector<8x8xf32>
    %cst_30 = arith.constant dense<0xFF800000> : vector<8xf32>
    %48 = vector.multi_reduction <maximumf>, %47, %cst_30 [1] : vector<8x8xf32> to vector<8xf32>
    %49 = vector.shape_cast %48 : vector<8xf32> to vector<8x1xf32>
    %50 = vector.broadcast %49 : vector<8x1xf32> to vector<8x8xf32>
    %51 = arith.subf %47, %50 : vector<8x8xf32>
    %52 = math.exp %51 : vector<8x8xf32>
    %cst_31 = arith.constant dense<0.000000e+00> : vector<8xf32>
    %53 = vector.multi_reduction <add>, %52, %cst_31 [1] : vector<8x8xf32> to vector<8xf32>
    %54 = vector.shape_cast %53 : vector<8xf32> to vector<8x1xf32>
    %55 = tpu.reciprocal %54 {approx = true} : vector<8x1xf32> -> vector<8x1xf32>
    %56 = vector.broadcast %55 : vector<8x1xf32> to vector<8x8xf32>
    %57 = arith.mulf %52, %56 : vector<8x8xf32>
    %58 = arith.truncf %57 : vector<8x8xf32> to vector<8x8xbf16>
    %59 = arith.truncf %42 : vector<8x8xf32> to vector<8x8xbf16>
    %cst_32 = arith.constant dense<0.000000e+00> : vector<8x8xf32>
    %60 = tpu.matmul %58, %59, %cst_32 {dimension_numbers = #tpu.dot_dimension_numbers<[1], [0], [0], [1], [0, 0, 1, 1], [], []>} : vector<8x8xbf16>, vector<8x8xbf16>, vector<8x8xf32> -> vector<8x8xf32>
    %61 = arith.truncf %60 : vector<8x8xf32> to vector<8x8xbf16>
    %c0_33 = arith.constant 0 : index
    %c0_34 = arith.constant 0 : index
    %c0_35 = arith.constant 0 : index
    %c0_36 = arith.constant 0 : index
    %62 = vector.load %arg9[%c0_33, %c0_34, %c0_35, %c0_36] : memref<1x4x8x32xbf16, #tpu.memory_space<vmem>>, vector<1x1x8x32xbf16>
    %63 = vector.shape_cast %62 : vector<1x1x8x32xbf16> to vector<8x32xbf16>
    %cst_37 = arith.constant dense<0.000000e+00> : vector<8x32xf32>
    %64 = tpu.matmul %61, %63, %cst_37 {dimension_numbers = #tpu.dot_dimension_numbers<[1], [0], [0], [1], [0, 0, 1, 1], [], []>} : vector<8x8xbf16>, vector<8x32xbf16>, vector<8x32xf32> -> vector<8x32xf32>
    %65 = arith.addf %33, %64 : vector<8x32xf32>
    %c0_38 = arith.constant 0 : index
    %c1 = arith.constant 1 : index
    %c0_39 = arith.constant 0 : index
    %c0_40 = arith.constant 0 : index
    %66 = vector.load %arg6[%c0_38, %c1, %c0_39, %c0_40] : memref<1x4x32x8xbf16, #tpu.memory_space<vmem>>, vector<1x1x32x8xbf16>
    %67 = vector.shape_cast %66 : vector<1x1x32x8xbf16> to vector<32x8xbf16>
    %cst_41 = arith.constant dense<0.000000e+00> : vector<8x8xf32>
    %68 = tpu.matmul %32, %67, %cst_41 {dimension_numbers = #tpu.dot_dimension_numbers<[1], [0], [0], [1], [0, 0, 1, 1], [], []>} : vector<8x32xbf16>, vector<32x8xbf16>, vector<8x8xf32> -> vector<8x8xf32>
    %c0_42 = arith.constant 0 : index
    %c1_43 = arith.constant 1 : index
    %c0_44 = arith.constant 0 : index
    %c0_45 = arith.constant 0 : index
    %69 = vector.load %arg7[%c0_42, %c1_43, %c0_44, %c0_45] : memref<1x4x32x8xbf16, #tpu.memory_space<vmem>>, vector<1x1x32x8xbf16>
    %70 = vector.shape_cast %69 : vector<1x1x32x8xbf16> to vector<32x8xbf16>
    %cst_46 = arith.constant dense<0.000000e+00> : vector<8x8xf32>
    %71 = tpu.matmul %32, %70, %cst_46 {dimension_numbers = #tpu.dot_dimension_numbers<[1], [0], [0], [1], [0, 0, 1, 1], [], []>} : vector<8x32xbf16>, vector<32x8xbf16>, vector<8x8xf32> -> vector<8x8xf32>
    %c0_47 = arith.constant 0 : index
    %c1_48 = arith.constant 1 : index
    %c0_49 = arith.constant 0 : index
    %c0_50 = arith.constant 0 : index
    %72 = vector.load %arg8[%c0_47, %c1_48, %c0_49, %c0_50] : memref<1x4x32x8xbf16, #tpu.memory_space<vmem>>, vector<1x1x32x8xbf16>
    %73 = vector.shape_cast %72 : vector<1x1x32x8xbf16> to vector<32x8xbf16>
    %cst_51 = arith.constant dense<0.000000e+00> : vector<8x8xf32>
    %74 = tpu.matmul %32, %73, %cst_51 {dimension_numbers = #tpu.dot_dimension_numbers<[1], [0], [0], [1], [0, 0, 1, 1], [], []>} : vector<8x32xbf16>, vector<32x8xbf16>, vector<8x8xf32> -> vector<8x8xf32>
    %75 = arith.truncf %68 : vector<8x8xf32> to vector<8x8xbf16>
    %76 = arith.truncf %71 : vector<8x8xf32> to vector<8x8xbf16>
    %cst_52 = arith.constant dense<0.000000e+00> : vector<8x8xf32>
    %77 = tpu.matmul %75, %76, %cst_52 {dimension_numbers = #tpu.dot_dimension_numbers<[1], [1], [0], [0], [0, 0, 1, 0], [], []>} : vector<8x8xbf16>, vector<8x8xbf16>, vector<8x8xf32> -> vector<8x8xf32>
    %cst_53 = arith.constant 0.353553385 : f32
    %78 = vector.broadcast %cst_53 : f32 to vector<8x8xf32>
    %79 = arith.mulf %77, %78 : vector<8x8xf32>
    %cst_54 = arith.constant dense<0xFF800000> : vector<8xf32>
    %80 = vector.multi_reduction <maximumf>, %79, %cst_54 [1] : vector<8x8xf32> to vector<8xf32>
    %81 = vector.shape_cast %80 : vector<8xf32> to vector<8x1xf32>
    %82 = vector.broadcast %81 : vector<8x1xf32> to vector<8x8xf32>
    %83 = arith.subf %79, %82 : vector<8x8xf32>
    %84 = math.exp %83 : vector<8x8xf32>
    %cst_55 = arith.constant dense<0.000000e+00> : vector<8xf32>
    %85 = vector.multi_reduction <add>, %84, %cst_55 [1] : vector<8x8xf32> to vector<8xf32>
    %86 = vector.shape_cast %85 : vector<8xf32> to vector<8x1xf32>
    %87 = tpu.reciprocal %86 {approx = true} : vector<8x1xf32> -> vector<8x1xf32>
    %88 = vector.broadcast %87 : vector<8x1xf32> to vector<8x8xf32>
    %89 = arith.mulf %84, %88 : vector<8x8xf32>
    %90 = arith.truncf %89 : vector<8x8xf32> to vector<8x8xbf16>
    %91 = arith.truncf %74 : vector<8x8xf32> to vector<8x8xbf16>
    %cst_56 = arith.constant dense<0.000000e+00> : vector<8x8xf32>
    %92 = tpu.matmul %90, %91, %cst_56 {dimension_numbers = #tpu.dot_dimension_numbers<[1], [0], [0], [1], [0, 0, 1, 1], [], []>} : vector<8x8xbf16>, vector<8x8xbf16>, vector<8x8xf32> -> vector<8x8xf32>
    %93 = arith.truncf %92 : vector<8x8xf32> to vector<8x8xbf16>
    %c0_57 = arith.constant 0 : index
    %c1_58 = arith.constant 1 : index
    %c0_59 = arith.constant 0 : index
    %c0_60 = arith.constant 0 : index
    %94 = vector.load %arg9[%c0_57, %c1_58, %c0_59, %c0_60] : memref<1x4x8x32xbf16, #tpu.memory_space<vmem>>, vector<1x1x8x32xbf16>
    %95 = vector.shape_cast %94 : vector<1x1x8x32xbf16> to vector<8x32xbf16>
    %cst_61 = arith.constant dense<0.000000e+00> : vector<8x32xf32>
    %96 = tpu.matmul %93, %95, %cst_61 {dimension_numbers = #tpu.dot_dimension_numbers<[1], [0], [0], [1], [0, 0, 1, 1], [], []>} : vector<8x8xbf16>, vector<8x32xbf16>, vector<8x32xf32> -> vector<8x32xf32>
    %97 = arith.addf %65, %96 : vector<8x32xf32>
    %c0_62 = arith.constant 0 : index
    %c2 = arith.constant 2 : index
    %c0_63 = arith.constant 0 : index
    %c0_64 = arith.constant 0 : index
    %98 = vector.load %arg6[%c0_62, %c2, %c0_63, %c0_64] : memref<1x4x32x8xbf16, #tpu.memory_space<vmem>>, vector<1x1x32x8xbf16>
    %99 = vector.shape_cast %98 : vector<1x1x32x8xbf16> to vector<32x8xbf16>
    %cst_65 = arith.constant dense<0.000000e+00> : vector<8x8xf32>
    %100 = tpu.matmul %32, %99, %cst_65 {dimension_numbers = #tpu.dot_dimension_numbers<[1], [0], [0], [1], [0, 0, 1, 1], [], []>} : vector<8x32xbf16>, vector<32x8xbf16>, vector<8x8xf32> -> vector<8x8xf32>
    %c0_66 = arith.constant 0 : index
    %c2_67 = arith.constant 2 : index
    %c0_68 = arith.constant 0 : index
    %c0_69 = arith.constant 0 : index
    %101 = vector.load %arg7[%c0_66, %c2_67, %c0_68, %c0_69] : memref<1x4x32x8xbf16, #tpu.memory_space<vmem>>, vector<1x1x32x8xbf16>
    %102 = vector.shape_cast %101 : vector<1x1x32x8xbf16> to vector<32x8xbf16>
    %cst_70 = arith.constant dense<0.000000e+00> : vector<8x8xf32>
    %103 = tpu.matmul %32, %102, %cst_70 {dimension_numbers = #tpu.dot_dimension_numbers<[1], [0], [0], [1], [0, 0, 1, 1], [], []>} : vector<8x32xbf16>, vector<32x8xbf16>, vector<8x8xf32> -> vector<8x8xf32>
    %c0_71 = arith.constant 0 : index
    %c2_72 = arith.constant 2 : index
    %c0_73 = arith.constant 0 : index
    %c0_74 = arith.constant 0 : index
    %104 = vector.load %arg8[%c0_71, %c2_72, %c0_73, %c0_74] : memref<1x4x32x8xbf16, #tpu.memory_space<vmem>>, vector<1x1x32x8xbf16>
    %105 = vector.shape_cast %104 : vector<1x1x32x8xbf16> to vector<32x8xbf16>
    %cst_75 = arith.constant dense<0.000000e+00> : vector<8x8xf32>
    %106 = tpu.matmul %32, %105, %cst_75 {dimension_numbers = #tpu.dot_dimension_numbers<[1], [0], [0], [1], [0, 0, 1, 1], [], []>} : vector<8x32xbf16>, vector<32x8xbf16>, vector<8x8xf32> -> vector<8x8xf32>
    %107 = arith.truncf %100 : vector<8x8xf32> to vector<8x8xbf16>
    %108 = arith.truncf %103 : vector<8x8xf32> to vector<8x8xbf16>
    %cst_76 = arith.constant dense<0.000000e+00> : vector<8x8xf32>
    %109 = tpu.matmul %107, %108, %cst_76 {dimension_numbers = #tpu.dot_dimension_numbers<[1], [1], [0], [0], [0, 0, 1, 0], [], []>} : vector<8x8xbf16>, vector<8x8xbf16>, vector<8x8xf32> -> vector<8x8xf32>
    %cst_77 = arith.constant 0.353553385 : f32
    %110 = vector.broadcast %cst_77 : f32 to vector<8x8xf32>
    %111 = arith.mulf %109, %110 : vector<8x8xf32>
    %cst_78 = arith.constant dense<0xFF800000> : vector<8xf32>
    %112 = vector.multi_reduction <maximumf>, %111, %cst_78 [1] : vector<8x8xf32> to vector<8xf32>
    %113 = vector.shape_cast %112 : vector<8xf32> to vector<8x1xf32>
    %114 = vector.broadcast %113 : vector<8x1xf32> to vector<8x8xf32>
    %115 = arith.subf %111, %114 : vector<8x8xf32>
    %116 = math.exp %115 : vector<8x8xf32>
    %cst_79 = arith.constant dense<0.000000e+00> : vector<8xf32>
    %117 = vector.multi_reduction <add>, %116, %cst_79 [1] : vector<8x8xf32> to vector<8xf32>
    %118 = vector.shape_cast %117 : vector<8xf32> to vector<8x1xf32>
    %119 = tpu.reciprocal %118 {approx = true} : vector<8x1xf32> -> vector<8x1xf32>
    %120 = vector.broadcast %119 : vector<8x1xf32> to vector<8x8xf32>
    %121 = arith.mulf %116, %120 : vector<8x8xf32>
    %122 = arith.truncf %121 : vector<8x8xf32> to vector<8x8xbf16>
    %123 = arith.truncf %106 : vector<8x8xf32> to vector<8x8xbf16>
    %cst_80 = arith.constant dense<0.000000e+00> : vector<8x8xf32>
    %124 = tpu.matmul %122, %123, %cst_80 {dimension_numbers = #tpu.dot_dimension_numbers<[1], [0], [0], [1], [0, 0, 1, 1], [], []>} : vector<8x8xbf16>, vector<8x8xbf16>, vector<8x8xf32> -> vector<8x8xf32>
    %125 = arith.truncf %124 : vector<8x8xf32> to vector<8x8xbf16>
    %c0_81 = arith.constant 0 : index
    %c2_82 = arith.constant 2 : index
    %c0_83 = arith.constant 0 : index
    %c0_84 = arith.constant 0 : index
    %126 = vector.load %arg9[%c0_81, %c2_82, %c0_83, %c0_84] : memref<1x4x8x32xbf16, #tpu.memory_space<vmem>>, vector<1x1x8x32xbf16>
    %127 = vector.shape_cast %126 : vector<1x1x8x32xbf16> to vector<8x32xbf16>
    %cst_85 = arith.constant dense<0.000000e+00> : vector<8x32xf32>
    %128 = tpu.matmul %125, %127, %cst_85 {dimension_numbers = #tpu.dot_dimension_numbers<[1], [0], [0], [1], [0, 0, 1, 1], [], []>} : vector<8x8xbf16>, vector<8x32xbf16>, vector<8x32xf32> -> vector<8x32xf32>
    %129 = arith.addf %97, %128 : vector<8x32xf32>
    %c0_86 = arith.constant 0 : index
    %c3 = arith.constant 3 : index
    %c0_87 = arith.constant 0 : index
    %c0_88 = arith.constant 0 : index
    %130 = vector.load %arg6[%c0_86, %c3, %c0_87, %c0_88] : memref<1x4x32x8xbf16, #tpu.memory_space<vmem>>, vector<1x1x32x8xbf16>
    %131 = vector.shape_cast %130 : vector<1x1x32x8xbf16> to vector<32x8xbf16>
    %cst_89 = arith.constant dense<0.000000e+00> : vector<8x8xf32>
    %132 = tpu.matmul %32, %131, %cst_89 {dimension_numbers = #tpu.dot_dimension_numbers<[1], [0], [0], [1], [0, 0, 1, 1], [], []>} : vector<8x32xbf16>, vector<32x8xbf16>, vector<8x8xf32> -> vector<8x8xf32>
    %c0_90 = arith.constant 0 : index
    %c3_91 = arith.constant 3 : index
    %c0_92 = arith.constant 0 : index
    %c0_93 = arith.constant 0 : index
    %133 = vector.load %arg7[%c0_90, %c3_91, %c0_92, %c0_93] : memref<1x4x32x8xbf16, #tpu.memory_space<vmem>>, vector<1x1x32x8xbf16>
    %134 = vector.shape_cast %133 : vector<1x1x32x8xbf16> to vector<32x8xbf16>
    %cst_94 = arith.constant dense<0.000000e+00> : vector<8x8xf32>
    %135 = tpu.matmul %32, %134, %cst_94 {dimension_numbers = #tpu.dot_dimension_numbers<[1], [0], [0], [1], [0, 0, 1, 1], [], []>} : vector<8x32xbf16>, vector<32x8xbf16>, vector<8x8xf32> -> vector<8x8xf32>
    %c0_95 = arith.constant 0 : index
    %c3_96 = arith.constant 3 : index
    %c0_97 = arith.constant 0 : index
    %c0_98 = arith.constant 0 : index
    %136 = vector.load %arg8[%c0_95, %c3_96, %c0_97, %c0_98] : memref<1x4x32x8xbf16, #tpu.memory_space<vmem>>, vector<1x1x32x8xbf16>
    %137 = vector.shape_cast %136 : vector<1x1x32x8xbf16> to vector<32x8xbf16>
    %cst_99 = arith.constant dense<0.000000e+00> : vector<8x8xf32>
    %138 = tpu.matmul %32, %137, %cst_99 {dimension_numbers = #tpu.dot_dimension_numbers<[1], [0], [0], [1], [0, 0, 1, 1], [], []>} : vector<8x32xbf16>, vector<32x8xbf16>, vector<8x8xf32> -> vector<8x8xf32>
    %139 = arith.truncf %132 : vector<8x8xf32> to vector<8x8xbf16>
    %140 = arith.truncf %135 : vector<8x8xf32> to vector<8x8xbf16>
    %cst_100 = arith.constant dense<0.000000e+00> : vector<8x8xf32>
    %141 = tpu.matmul %139, %140, %cst_100 {dimension_numbers = #tpu.dot_dimension_numbers<[1], [1], [0], [0], [0, 0, 1, 0], [], []>} : vector<8x8xbf16>, vector<8x8xbf16>, vector<8x8xf32> -> vector<8x8xf32>
    %cst_101 = arith.constant 0.353553385 : f32
    %142 = vector.broadcast %cst_101 : f32 to vector<8x8xf32>
    %143 = arith.mulf %141, %142 : vector<8x8xf32>
    %cst_102 = arith.constant dense<0xFF800000> : vector<8xf32>
    %144 = vector.multi_reduction <maximumf>, %143, %cst_102 [1] : vector<8x8xf32> to vector<8xf32>
    %145 = vector.shape_cast %144 : vector<8xf32> to vector<8x1xf32>
    %146 = vector.broadcast %145 : vector<8x1xf32> to vector<8x8xf32>
    %147 = arith.subf %143, %146 : vector<8x8xf32>
    %148 = math.exp %147 : vector<8x8xf32>
    %cst_103 = arith.constant dense<0.000000e+00> : vector<8xf32>
    %149 = vector.multi_reduction <add>, %148, %cst_103 [1] : vector<8x8xf32> to vector<8xf32>
    %150 = vector.shape_cast %149 : vector<8xf32> to vector<8x1xf32>
    %151 = tpu.reciprocal %150 {approx = true} : vector<8x1xf32> -> vector<8x1xf32>
    %152 = vector.broadcast %151 : vector<8x1xf32> to vector<8x8xf32>
    %153 = arith.mulf %148, %152 : vector<8x8xf32>
    %154 = arith.truncf %153 : vector<8x8xf32> to vector<8x8xbf16>
    %155 = arith.truncf %138 : vector<8x8xf32> to vector<8x8xbf16>
    %cst_104 = arith.constant dense<0.000000e+00> : vector<8x8xf32>
    %156 = tpu.matmul %154, %155, %cst_104 {dimension_numbers = #tpu.dot_dimension_numbers<[1], [0], [0], [1], [0, 0, 1, 1], [], []>} : vector<8x8xbf16>, vector<8x8xbf16>, vector<8x8xf32> -> vector<8x8xf32>
    %157 = arith.truncf %156 : vector<8x8xf32> to vector<8x8xbf16>
    %c0_105 = arith.constant 0 : index
    %c3_106 = arith.constant 3 : index
    %c0_107 = arith.constant 0 : index
    %c0_108 = arith.constant 0 : index
    %158 = vector.load %arg9[%c0_105, %c3_106, %c0_107, %c0_108] : memref<1x4x8x32xbf16, #tpu.memory_space<vmem>>, vector<1x1x8x32xbf16>
    %159 = vector.shape_cast %158 : vector<1x1x8x32xbf16> to vector<8x32xbf16>
    %cst_109 = arith.constant dense<0.000000e+00> : vector<8x32xf32>
    %160 = tpu.matmul %157, %159, %cst_109 {dimension_numbers = #tpu.dot_dimension_numbers<[1], [0], [0], [1], [0, 0, 1, 1], [], []>} : vector<8x8xbf16>, vector<8x32xbf16>, vector<8x32xf32> -> vector<8x32xf32>
    %161 = arith.addf %129, %160 : vector<8x32xf32>
    %162 = arith.addf %3, %161 : vector<8x32xf32>
    %c0_110 = arith.constant 0 : index
    %c0_111 = arith.constant 0 : index
    %c0_112 = arith.constant 0 : index
    %163 = vector.load %arg10[%c0_110, %c0_111, %c0_112] : memref<1x1x32xbf16, #tpu.memory_space<vmem>>, vector<1x1x32xbf16>
    %164 = vector.shape_cast %163 : vector<1x1x32xbf16> to vector<1x32xbf16>
    %c0_113 = arith.constant 0 : index
    %c0_114 = arith.constant 0 : index
    %c0_115 = arith.constant 0 : index
    %165 = vector.load %arg11[%c0_113, %c0_114, %c0_115] : memref<1x1x32xbf16, #tpu.memory_space<vmem>>, vector<1x1x32xbf16>
    %166 = vector.shape_cast %165 : vector<1x1x32xbf16> to vector<1x32xbf16>
    %cst_116 = arith.constant dense<0.000000e+00> : vector<8xf32>
    %167 = vector.multi_reduction <add>, %162, %cst_116 [1] : vector<8x32xf32> to vector<8xf32>
    %168 = vector.shape_cast %167 : vector<8xf32> to vector<8x1xf32>
    %cst_117 = arith.constant 3.200000e+01 : f32
    %169 = vector.broadcast %cst_117 : f32 to vector<8x1xf32>
    %170 = arith.divf %168, %169 : vector<8x1xf32>
    %171 = vector.broadcast %170 : vector<8x1xf32> to vector<8x32xf32>
    %172 = arith.subf %162, %171 : vector<8x32xf32>
    %173 = arith.mulf %172, %172 : vector<8x32xf32>
    %cst_118 = arith.constant dense<0.000000e+00> : vector<8xf32>
    %174 = vector.multi_reduction <add>, %173, %cst_118 [1] : vector<8x32xf32> to vector<8xf32>
    %175 = vector.shape_cast %174 : vector<8xf32> to vector<8x1xf32>
    %cst_119 = arith.constant 3.200000e+01 : f32
    %176 = vector.broadcast %cst_119 : f32 to vector<8x1xf32>
    %177 = arith.divf %175, %176 : vector<8x1xf32>
    %178 = vector.broadcast %170 : vector<8x1xf32> to vector<8x32xf32>
    %179 = arith.subf %162, %178 : vector<8x32xf32>
    %cst_120 = arith.constant 9.99999974E-6 : f32
    %180 = vector.broadcast %cst_120 : f32 to vector<8x1xf32>
    %181 = arith.addf %177, %180 : vector<8x1xf32>
    %182 = math.rsqrt %181 : vector<8x1xf32>
    %183 = vector.broadcast %182 : vector<8x1xf32> to vector<8x32xf32>
    %184 = arith.mulf %179, %183 : vector<8x32xf32>
    %185 = arith.extf %164 : vector<1x32xbf16> to vector<1x32xf32>
    %186 = vector.broadcast %185 : vector<1x32xf32> to vector<8x32xf32>
    %187 = arith.mulf %184, %186 : vector<8x32xf32>
    %188 = arith.extf %166 : vector<1x32xbf16> to vector<1x32xf32>
    %189 = vector.broadcast %188 : vector<1x32xf32> to vector<8x32xf32>
    %190 = arith.addf %187, %189 : vector<8x32xf32>
    %191 = arith.truncf %190 : vector<8x32xf32> to vector<8x32xbf16>
    %c0_121 = arith.constant 0 : index
    %c0_122 = arith.constant 0 : index
    %c0_123 = arith.constant 0 : index
    %192 = vector.load %arg12[%c0_121, %c0_122, %c0_123] : memref<1x32x128xbf16, #tpu.memory_space<vmem>>, vector<1x32x128xbf16>
    %193 = vector.shape_cast %192 : vector<1x32x128xbf16> to vector<32x128xbf16>
    %cst_124 = arith.constant dense<0.000000e+00> : vector<8x128xf32>
    %194 = tpu.matmul %191, %193, %cst_124 {dimension_numbers = #tpu.dot_dimension_numbers<[1], [0], [0], [1], [0, 0, 1, 1], [], []>} : vector<8x32xbf16>, vector<32x128xbf16>, vector<8x128xf32> -> vector<8x128xf32>
    %c0_125 = arith.constant 0 : index
    %c0_126 = arith.constant 0 : index
    %c0_127 = arith.constant 0 : index
    %195 = vector.load %arg13[%c0_125, %c0_126, %c0_127] : memref<1x1x128xbf16, #tpu.memory_space<vmem>>, vector<1x1x128xbf16>
    %196 = vector.shape_cast %195 : vector<1x1x128xbf16> to vector<1x128xbf16>
    %197 = arith.extf %196 : vector<1x128xbf16> to vector<1x128xf32>
    %198 = vector.broadcast %197 : vector<1x128xf32> to vector<8x128xf32>
    %199 = arith.addf %194, %198 : vector<8x128xf32>
    %cst_128 = arith.constant dense<0xFF800000> : vector<8xf32>
    %200 = vector.multi_reduction <maximumf>, %199, %cst_128 [1] : vector<8x128xf32> to vector<8xf32>
    %201 = vector.shape_cast %200 : vector<8xf32> to vector<8x1xf32>
    %202 = vector.broadcast %201 : vector<8x1xf32> to vector<8x128xf32>
    %203 = arith.subf %199, %202 : vector<8x128xf32>
    %204 = math.exp %203 : vector<8x128xf32>
    %cst_129 = arith.constant dense<0.000000e+00> : vector<8xf32>
    %205 = vector.multi_reduction <add>, %204, %cst_129 [1] : vector<8x128xf32> to vector<8xf32>
    %206 = vector.shape_cast %205 : vector<8xf32> to vector<8x1xf32>
    %207 = tpu.reciprocal %206 {approx = true} : vector<8x1xf32> -> vector<8x1xf32>
    %208 = vector.broadcast %207 : vector<8x1xf32> to vector<8x128xf32>
    %209 = arith.mulf %204, %208 : vector<8x128xf32>
    %210 = arith.truncf %209 : vector<8x128xf32> to vector<8x128xbf16>
    %c0_130 = arith.constant 0 : index
    %c0_131 = arith.constant 0 : index
    %c0_132 = arith.constant 0 : index
    %211 = vector.load %arg14[%c0_130, %c0_131, %c0_132] : memref<1x128x32xbf16, #tpu.memory_space<vmem>>, vector<1x128x32xbf16>
    %212 = vector.shape_cast %211 : vector<1x128x32xbf16> to vector<128x32xbf16>
    %cst_133 = arith.constant dense<0.000000e+00> : vector<8x32xf32>
    %213 = tpu.matmul %210, %212, %cst_133 {dimension_numbers = #tpu.dot_dimension_numbers<[1], [0], [0], [1], [0, 0, 1, 1], [], []>} : vector<8x128xbf16>, vector<128x32xbf16>, vector<8x32xf32> -> vector<8x32xf32>
    %c0_134 = arith.constant 0 : index
    %c0_135 = arith.constant 0 : index
    %c0_136 = arith.constant 0 : index
    %214 = vector.load %arg15[%c0_134, %c0_135, %c0_136] : memref<1x1x32xbf16, #tpu.memory_space<vmem>>, vector<1x1x32xbf16>
    %215 = vector.shape_cast %214 : vector<1x1x32xbf16> to vector<1x32xbf16>
    %216 = arith.extf %215 : vector<1x32xbf16> to vector<1x32xf32>
    %217 = vector.broadcast %216 : vector<1x32xf32> to vector<8x32xf32>
    %218 = arith.addf %213, %217 : vector<8x32xf32>
    %219 = arith.addf %162, %218 : vector<8x32xf32>
    %c0_137 = arith.constant 0 : index
    %c0_138 = arith.constant 0 : index
    %220 = vector.load %arg18[%c0_137, %c0_138] : memref<8x32xf32, #tpu.memory_space<vmem>>, vector<8x32xf32>
    tpu.vector_store %arg18[%c0_137, %c0_138], %219 {strides = array<i32>} : memref<8x32xf32, #tpu.memory_space<vmem>>, vector<8x32xf32>,
    %c1_i32 = arith.constant 1 : i32
    %221 = arith.cmpi eq, %arg1, %c1_i32 : i32
    %222 = arith.extui %221 : i1 to i32
    %c0_i32_139 = arith.constant 0 : i32
    %223 = arith.cmpi ne, %222, %c0_i32_139 : i32
    scf.if %223 {
      %224 = arith.truncf %219 : vector<8x32xf32> to vector<8x32xbf16>
      %c0_140 = arith.constant 0 : index
      %c0_141 = arith.constant 0 : index
      %225 = vector.load %arg16[%c0_140, %c0_141] : memref<32x16xbf16, #tpu.memory_space<vmem>>, vector<32x16xbf16>
      %cst_142 = arith.constant dense<0.000000e+00> : vector<8x16xf32>
      %226 = tpu.matmul %224, %225, %cst_142 {dimension_numbers = #tpu.dot_dimension_numbers<[1], [0], [0], [1], [0, 0, 1, 1], [], []>} : vector<8x32xbf16>, vector<32x16xbf16>, vector<8x16xf32> -> vector<8x16xf32>
      %c0_143 = arith.constant 0 : index
      %c0_144 = arith.constant 0 : index
      %c0_145 = arith.constant 0 : index
      %227 = vector.load %arg17[%c0_143, %c0_144, %c0_145] : memref<1x8x16xf32, #tpu.memory_space<vmem>>, vector<1x8x16xf32>
      %228 = vector.shape_cast %227 : vector<1x8x16xf32> to vector<8x16xf32>
      %229 = vector.shape_cast %226 : vector<8x16xf32> to vector<1x8x16xf32>
      tpu.vector_store %arg17[%c0_143, %c0_144, %c0_145], %229 {strides = array<i32>} : memref<1x8x16xf32, #tpu.memory_space<vmem>>, vector<1x8x16xf32>,
    } else {
    }
    return
  }
  func.func @transform_0(%arg0: i32, %arg1: i32) -> (i32, i32, i32) {
    %c0_i32 = arith.constant 0 : i32
    %c0_i32_0 = arith.constant 0 : i32
    %c0_i32_1 = arith.constant 0 : i32
    return %arg0, %c0_i32, %c0_i32_0 : i32, i32, i32
  }
  func.func @transform_1(%arg0: i32, %arg1: i32) -> (i32, i32) {
    %c0_i32 = arith.constant 0 : i32
    %c0_i32_0 = arith.constant 0 : i32
    %c0_i32_1 = arith.constant 0 : i32
    return %c0_i32, %c0_i32_0 : i32, i32
  }
  func.func @transform_2(%arg0: i32, %arg1: i32) -> (i32, i32, i32) {
    %c0_i32 = arith.constant 0 : i32
    %c0_i32_0 = arith.constant 0 : i32
    %c0_i32_1 = arith.constant 0 : i32
    return %arg1, %c0_i32, %c0_i32_0 : i32, i32, i32
  }
  func.func @transform_3(%arg0: i32, %arg1: i32) -> (i32, i32, i32) {
    %c0_i32 = arith.constant 0 : i32
    %c0_i32_0 = arith.constant 0 : i32
    %c0_i32_1 = arith.constant 0 : i32
    return %arg1, %c0_i32, %c0_i32_0 : i32, i32, i32
  }
  func.func @transform_4(%arg0: i32, %arg1: i32) -> (i32, i32, i32, i32) {
    %c0_i32 = arith.constant 0 : i32
    %c0_i32_0 = arith.constant 0 : i32
    %c0_i32_1 = arith.constant 0 : i32
    %c0_i32_2 = arith.constant 0 : i32
    return %arg1, %c0_i32, %c0_i32_0, %c0_i32_1 : i32, i32, i32, i32
  }
  func.func @transform_5(%arg0: i32, %arg1: i32) -> (i32, i32, i32, i32) {
    %c0_i32 = arith.constant 0 : i32
    %c0_i32_0 = arith.constant 0 : i32
    %c0_i32_1 = arith.constant 0 : i32
    %c0_i32_2 = arith.constant 0 : i32
    return %arg1, %c0_i32, %c0_i32_0, %c0_i32_1 : i32, i32, i32, i32
  }
  func.func @transform_6(%arg0: i32, %arg1: i32) -> (i32, i32, i32, i32) {
    %c0_i32 = arith.constant 0 : i32
    %c0_i32_0 = arith.constant 0 : i32
    %c0_i32_1 = arith.constant 0 : i32
    %c0_i32_2 = arith.constant 0 : i32
    return %arg1, %c0_i32, %c0_i32_0, %c0_i32_1 : i32, i32, i32, i32
  }
  func.func @transform_7(%arg0: i32, %arg1: i32) -> (i32, i32, i32, i32) {
    %c0_i32 = arith.constant 0 : i32
    %c0_i32_0 = arith.constant 0 : i32
    %c0_i32_1 = arith.constant 0 : i32
    %c0_i32_2 = arith.constant 0 : i32
    return %arg1, %c0_i32, %c0_i32_0, %c0_i32_1 : i32, i32, i32, i32
  }
  func.func @transform_8(%arg0: i32, %arg1: i32) -> (i32, i32, i32) {
    %c0_i32 = arith.constant 0 : i32
    %c0_i32_0 = arith.constant 0 : i32
    %c0_i32_1 = arith.constant 0 : i32
    return %arg1, %c0_i32, %c0_i32_0 : i32, i32, i32
  }
  func.func @transform_9(%arg0: i32, %arg1: i32) -> (i32, i32, i32) {
    %c0_i32 = arith.constant 0 : i32
    %c0_i32_0 = arith.constant 0 : i32
    %c0_i32_1 = arith.constant 0 : i32
    return %arg1, %c0_i32, %c0_i32_0 : i32, i32, i32
  }
  func.func @transform_10(%arg0: i32, %arg1: i32) -> (i32, i32, i32) {
    %c0_i32 = arith.constant 0 : i32
    %c0_i32_0 = arith.constant 0 : i32
    %c0_i32_1 = arith.constant 0 : i32
    return %arg1, %c0_i32, %c0_i32_0 : i32, i32, i32
  }
  func.func @transform_11(%arg0: i32, %arg1: i32) -> (i32, i32, i32) {
    %c0_i32 = arith.constant 0 : i32
    %c0_i32_0 = arith.constant 0 : i32
    %c0_i32_1 = arith.constant 0 : i32
    return %arg1, %c0_i32, %c0_i32_0 : i32, i32, i32
  }
  func.func @transform_12(%arg0: i32, %arg1: i32) -> (i32, i32, i32) {
    %c0_i32 = arith.constant 0 : i32
    %c0_i32_0 = arith.constant 0 : i32
    %c0_i32_1 = arith.constant 0 : i32
    return %arg1, %c0_i32, %c0_i32_0 : i32, i32, i32
  }
  func.func @transform_13(%arg0: i32, %arg1: i32) -> (i32, i32, i32) {
    %c0_i32 = arith.constant 0 : i32
    %c0_i32_0 = arith.constant 0 : i32
    %c0_i32_1 = arith.constant 0 : i32
    return %arg1, %c0_i32, %c0_i32_0 : i32, i32, i32
  }
  func.func @transform_14(%arg0: i32, %arg1: i32) -> (i32, i32) {
    %c0_i32 = arith.constant 0 : i32
    %c0_i32_0 = arith.constant 0 : i32
    %c0_i32_1 = arith.constant 0 : i32
    return %c0_i32, %c0_i32_0 : i32, i32
  }
  func.func @transform_15(%arg0: i32, %arg1: i32) -> (i32, i32, i32) {
    %c0_i32 = arith.constant 0 : i32
    %c0_i32_0 = arith.constant 0 : i32
    %c0_i32_1 = arith.constant 0 : i32
    return %arg0, %c0_i32, %c0_i32_0 : i32, i32, i32
  }
}

</mosaic_0001>

<llo_original>
// kernel: tpu_custom_call.1
$region0: #{tpu_custom_call.1}
  #allocation0 [shape = 'u32[]', space=smem, size = 0x4, offset = 0x4, fixed_abs, tag = 'smem constant byte address 0x4 - core index']
  #allocation1 [shape = 'u32[72,128]{1,0:T(1,128)}', space=vmem, size = 0x9000, scoped, tag = 'internal scratch']
  #allocation2 [shape = 'f32[8,32]{1,0:T(8,128)}', space=vmem, size = 0x1000, scoped, tag = 'scratch operand']
  %s0 = inlined_call_operand.vmem [shape: f32[2,8,16], index: 0, kind: input, shape index: {}]
  %s1 = inlined_call_operand.vmem [shape: bf16[16,32], index: 1, kind: input, shape index: {}]
  %s2 = inlined_call_operand.vmem [shape: bf16[2,1,32], index: 2, kind: input, shape index: {}]
  %s3 = inlined_call_operand.vmem [shape: bf16[2,1,32], index: 3, kind: input, shape index: {}]
  %s4 = inlined_call_operand.vmem [shape: bf16[2,4,32,8], index: 4, kind: input, shape index: {}]
  %s5 = inlined_call_operand.vmem [shape: bf16[2,4,32,8], index: 5, kind: input, shape index: {}]
  %s6 = inlined_call_operand.vmem [shape: bf16[2,4,32,8], index: 6, kind: input, shape index: {}]
  %s7 = inlined_call_operand.vmem [shape: bf16[2,4,8,32], index: 7, kind: input, shape index: {}]
  %s8 = inlined_call_operand.vmem [shape: bf16[2,1,32], index: 8, kind: input, shape index: {}]
  %s9 = inlined_call_operand.vmem [shape: bf16[2,1,32], index: 9, kind: input, shape index: {}]
  %s10 = inlined_call_operand.vmem [shape: bf16[2,32,128], index: 10, kind: input, shape index: {}]
  %s11 = inlined_call_operand.vmem [shape: bf16[2,1,128], index: 11, kind: input, shape index: {}]
  %s12 = inlined_call_operand.vmem [shape: bf16[2,128,32], index: 12, kind: input, shape index: {}]
  %s13 = inlined_call_operand.vmem [shape: bf16[2,1,32], index: 13, kind: input, shape index: {}]
  %s14 = inlined_call_operand.vmem [shape: bf16[32,16], index: 14, kind: input, shape index: {}]
  %s15 = inlined_call_operand.hbm [shape: f32[2,8,16], index: 15, kind: output, shape index: {}]
  %s16 = sld [smem:[#allocation0]]
  $region101: #{tpu_custom_call.1} parent=0
    _
  %s18 = ssub.s32 1, %s16
  %s19 = scalar_select 0, %s18, %s16
  $region1: #{tpu_custom_call.1} parent=0
    #allocation3 [shape = 'u8[8192]{0}', space=vmem, size = 0x2000, scoped, tag = 'output window, operand 0']
    #allocation4 [shape = 's32[2]{0}', space=sflag, size = 0x8, scoped, tag = 'scoped memory for tpu_custom_call.1']
    %20 = vsyncpa [#allocation4], 0
    %s21 = scalar_lea.sflag [#allocation4], 1
    %22 = vsyncpa %s21, 0
    loop: start=0, step=1, limit=6
    $region2: #{tpu_custom_call.1} parent=1 // loop_pre_header
      _
    $region3: #{tpu_custom_call.1} parent=1 // loop_header
      %s24 = sphi 0, %s28
      %p25 = scmp.ge.s32.totalorder %s24, 6
      %s31 = sphi 0, %s43
      %s32 = sphi 0, %s39
      %s33 = sphi 0, %s31
      %s34 = sphi 0, %s32
      %s35 = sphi 0, %s33
      %s36 = sphi 0, %s34
      %s46 = sphi 0, %s48
      %s49 = sphi 0, %s46
      %s50 = sphi 0, %s49
      %s66 = sphi 0, %s50
      %s70 = sphi 0, %s70
      %s72 = sphi 0, %s70
      %s73 = sphi 0, %s72
      %s87 = sphi 0, %s73
      %s93 = sphi 0, %s95
      %s96 = sphi 0, %s93
      %s97 = sphi 0, %s96
      %s113 = sphi 0, %s97
      %s119 = sphi 0, %s121
      %s122 = sphi 0, %s119
      %s123 = sphi 0, %s122
      %s139 = sphi 0, %s123
      %s145 = sphi 0, %s147
      %s148 = sphi 0, %s145
      %s149 = sphi 0, %s148
      %s165 = sphi 0, %s149
      %s171 = sphi 0, %s173
      %s174 = sphi 0, %s171
      %s175 = sphi 0, %s174
      %s191 = sphi 0, %s175
      %s197 = sphi 0, %s199
      %s200 = sphi 0, %s197
      %s201 = sphi 0, %s200
      %s217 = sphi 0, %s201
      %s223 = sphi 0, %s225
      %s226 = sphi 0, %s223
      %s227 = sphi 0, %s226
      %s243 = sphi 0, %s227
      %s249 = sphi 0, %s251
      %s252 = sphi 0, %s249
      %s253 = sphi 0, %s252
      %s269 = sphi 0, %s253
      %s275 = sphi 0, %s277
      %s278 = sphi 0, %s275
      %s279 = sphi 0, %s278
      %s295 = sphi 0, %s279
      %s301 = sphi 0, %s303
      %s304 = sphi 0, %s301
      %s305 = sphi 0, %s304
      %s321 = sphi 0, %s305
      %s327 = sphi 0, %s329
      %s330 = sphi 0, %s327
      %s331 = sphi 0, %s330
      %s347 = sphi 0, %s331
      %s353 = sphi 0, %s355
      %s356 = sphi 0, %s353
      %s357 = sphi 0, %s356
      %s373 = sphi 0, %s357
      %s379 = sphi 0, %s381
      %s382 = sphi 0, %s379
      %s383 = sphi 0, %s382
      %s399 = sphi 0, %s383
      %s403 = sphi 0, %s403
      %s405 = sphi 0, %s403
      %s406 = sphi 0, %s405
      %s420 = sphi 0, %s406
      %s426 = sphi 0, %s428
      %s429 = sphi 0, %s426
      %s430 = sphi 0, %s429
      %s446 = sphi 0, %s430
    $region4: #{tpu_custom_call.1} parent=1 // loop_header_branch
      %27 = sbr.rel (%p25) target = $region8
    $region5: #{tpu_custom_call.1} parent=1 // loop_body
      %s29 = ssub.s32 %s24, 1
      %s30 = ssub.s32 %s24, 2
      %s37 = sadd.s32 1, %s32
      %p38 = scmp.ge.s32.totalorder %s37, 2
      %s39 = scalar_select %p38, 0, %s37
      %s40 = sadd.s32 1, %s31
      %s41 = scalar_select %p38, %s40, %s31
      %p42 = scmp.ge.s32.totalorder %s41, 2
      %s43 = scalar_select %p42, 0, %s41
      %s44 = ssub.s32 %s31, %s43
      %p45 = scmp.eq.s32.totalorder %s44, 0
      %s47 = sadd.s32 %s46, 1
      %s48 = scalar_select %p45, %s46, %s47
      %p51 = pneg %p45
      %p52 = scmp.eq.s32.totalorder %s24, 3
      %p53 = por %p51, %p52
      %p54 = scmp.ne.s32.totalorder %s46, %s49
      %p55 = scmp.eq.s32.totalorder %s24, 0
      %p56 = por %p54, %p55
      %p57 = scmp.ne.s32.totalorder %s46, %s49
      %p58 = scmp.eq.s32.totalorder %s29, 3
      %p59 = por %p57, %p58
      %p60 = scmp.ne.s32.totalorder %s49, %s50
      %p61 = scmp.eq.s32.totalorder %s29, 0
      %p62 = por %p60, %p61
      %p63 = scmp.ne.s32.totalorder %s49, %s50
      %p64 = scmp.eq.s32.totalorder %s30, 3
      %p65 = por %p63, %p64
      %p67 = scmp.ne.s32.totalorder %s50, %s66
      %p68 = scmp.eq.s32.totalorder %s30, 0
      %p69 = por %p67, %p68
      %s71 = sadd.s32 %s70, 1
      %p74 = scmp.eq.s32.totalorder %s24, 3
      %p75 = scmp.ne.s32.totalorder %s70, %s72
      %p76 = scmp.eq.s32.totalorder %s24, 0
      %p77 = por %p75, %p76
      %p78 = scmp.ne.s32.totalorder %s70, %s72
      %p79 = scmp.eq.s32.totalorder %s29, 3
      %p80 = por %p78, %p79
      %p81 = scmp.ne.s32.totalorder %s72, %s73
      %p82 = scmp.eq.s32.totalorder %s29, 0
      %p83 = por %p81, %p82
      %p84 = scmp.ne.s32.totalorder %s72, %s73
      %p85 = scmp.eq.s32.totalorder %s30, 3
      %p86 = por %p84, %p85
      %p88 = scmp.ne.s32.totalorder %s73, %s87
      %p89 = scmp.eq.s32.totalorder %s30, 0
      %p90 = por %p88, %p89
      %s91 = ssub.s32 %s32, %s39
      %p92 = scmp.eq.s32.totalorder %s91, 0
      %s94 = sadd.s32 %s93, 1
      %s95 = scalar_select %p92, %s93, %s94
      %p98 = pneg %p92
      %p99 = scmp.eq.s32.totalorder %s24, 3
      %p100 = por %p98, %p99
      %p101 = scmp.ne.s32.totalorder %s93, %s96
      %p102 = scmp.eq.s32.totalorder %s24, 0
      %p103 = por %p101, %p102
      %p104 = scmp.ne.s32.totalorder %s93, %s96
      %p105 = scmp.eq.s32.totalorder %s29, 3
      %p106 = por %p104, %p105
      %p107 = scmp.ne.s32.totalorder %s96, %s97
      %p108 = scmp.eq.s32.totalorder %s29, 0
      %p109 = por %p107, %p108
      %p110 = scmp.ne.s32.totalorder %s96, %s97
      %p111 = scmp.eq.s32.totalorder %s30, 3
      %p112 = por %p110, %p111
      %p114 = scmp.ne.s32.totalorder %s97, %s113
      %p115 = scmp.eq.s32.totalorder %s30, 0
      %p116 = por %p114, %p115
      %s117 = ssub.s32 %s32, %s39
      %p118 = scmp.eq.s32.totalorder %s117, 0
      %s120 = sadd.s32 %s119, 1
      %s121 = scalar_select %p118, %s119, %s120
      %p124 = pneg %p118
      %p125 = scmp.eq.s32.totalorder %s24, 3
      %p126 = por %p124, %p125
      %p127 = scmp.ne.s32.totalorder %s119, %s122
      %p128 = scmp.eq.s32.totalorder %s24, 0
      %p129 = por %p127, %p128
      %p130 = scmp.ne.s32.totalorder %s119, %s122
      %p131 = scmp.eq.s32.totalorder %s29, 3
      %p132 = por %p130, %p131
      %p133 = scmp.ne.s32.totalorder %s122, %s123
      %p134 = scmp.eq.s32.totalorder %s29, 0
      %p135 = por %p133, %p134
      %p136 = scmp.ne.s32.totalorder %s122, %s123
      %p137 = scmp.eq.s32.totalorder %s30, 3
      %p138 = por %p136, %p137
      %p140 = scmp.ne.s32.totalorder %s123, %s139
      %p141 = scmp.eq.s32.totalorder %s30, 0
      %p142 = por %p140, %p141
      %s143 = ssub.s32 %s32, %s39
      %p144 = scmp.eq.s32.totalorder %s143, 0
      %s146 = sadd.s32 %s145, 1
      %s147 = scalar_select %p144, %s145, %s146
      %p150 = pneg %p144
      %p151 = scmp.eq.s32.totalorder %s24, 3
      %p152 = por %p150, %p151
      %p153 = scmp.ne.s32.totalorder %s145, %s148
      %p154 = scmp.eq.s32.totalorder %s24, 0
      %p155 = por %p153, %p154
      %p156 = scmp.ne.s32.totalorder %s145, %s148
      %p157 = scmp.eq.s32.totalorder %s29, 3
      %p158 = por %p156, %p157
      %p159 = scmp.ne.s32.totalorder %s148, %s149
      %p160 = scmp.eq.s32.totalorder %s29, 0
      %p161 = por %p159, %p160
      %p162 = scmp.ne.s32.totalorder %s148, %s149
      %p163 = scmp.eq.s32.totalorder %s30, 3
      %p164 = por %p162, %p163
      %p166 = scmp.ne.s32.totalorder %s149, %s165
      %p167 = scmp.eq.s32.totalorder %s30, 0
      %p168 = por %p166, %p167
      %s169 = ssub.s32 %s32, %s39
      %p170 = scmp.eq.s32.totalorder %s169, 0
      %s172 = sadd.s32 %s171, 1
      %s173 = scalar_select %p170, %s171, %s172
      %p176 = pneg %p170
      %p177 = scmp.eq.s32.totalorder %s24, 3
      %p178 = por %p176, %p177
      %p179 = scmp.ne.s32.totalorder %s171, %s174
      %p180 = scmp.eq.s32.totalorder %s24, 0
      %p181 = por %p179, %p180
      %p182 = scmp.ne.s32.totalorder %s171, %s174
      %p183 = scmp.eq.s32.totalorder %s29, 3
      %p184 = por %p182, %p183
      %p185 = scmp.ne.s32.totalorder %s174, %s175
      %p186 = scmp.eq.s32.totalorder %s29, 0
      %p187 = por %p185, %p186
      %p188 = scmp.ne.s32.totalorder %s174, %s175
      %p189 = scmp.eq.s32.totalorder %s30, 3
      %p190 = por %p188, %p189
      %p192 = scmp.ne.s32.totalorder %s175, %s191
      %p193 = scmp.eq.s32.totalorder %s30, 0
      %p194 = por %p192, %p193
      %s195 = ssub.s32 %s32, %s39
      %p196 = scmp.eq.s32.totalorder %s195, 0
      %s198 = sadd.s32 %s197, 1
      %s199 = scalar_select %p196, %s197, %s198
      %p202 = pneg %p196
      %p203 = scmp.eq.s32.totalorder %s24, 3
      %p204 = por %p202, %p203
      %p205 = scmp.ne.s32.totalorder %s197, %s200
      %p206 = scmp.eq.s32.totalorder %s24, 0
      %p207 = por %p205, %p206
      %p208 = scmp.ne.s32.totalorder %s197, %s200
      %p209 = scmp.eq.s32.totalorder %s29, 3
      %p210 = por %p208, %p209
      %p211 = scmp.ne.s32.totalorder %s200, %s201
      %p212 = scmp.eq.s32.totalorder %s29, 0
      %p213 = por %p211, %p212
      %p214 = scmp.ne.s32.totalorder %s200, %s201
      %p215 = scmp.eq.s32.totalorder %s30, 3
      %p216 = por %p214, %p215
      %p218 = scmp.ne.s32.totalorder %s201, %s217
      %p219 = scmp.eq.s32.totalorder %s30, 0
      %p220 = por %p218, %p219
      %s221 = ssub.s32 %s32, %s39
      %p222 = scmp.eq.s32.totalorder %s221, 0
      %s224 = sadd.s32 %s223, 1
      %s225 = scalar_select %p222, %s223, %s224
      %p228 = pneg %p222
      %p229 = scmp.eq.s32.totalorder %s24, 3
      %p230 = por %p228, %p229
      %p231 = scmp.ne.s32.totalorder %s223, %s226
      %p232 = scmp.eq.s32.totalorder %s24, 0
      %p233 = por %p231, %p232
      %p234 = scmp.ne.s32.totalorder %s223, %s226
      %p235 = scmp.eq.s32.totalorder %s29, 3
      %p236 = por %p234, %p235
      %p237 = scmp.ne.s32.totalorder %s226, %s227
      %p238 = scmp.eq.s32.totalorder %s29, 0
      %p239 = por %p237, %p238
      %p240 = scmp.ne.s32.totalorder %s226, %s227
      %p241 = scmp.eq.s32.totalorder %s30, 3
      %p242 = por %p240, %p241
      %p244 = scmp.ne.s32.totalorder %s227, %s243
      %p245 = scmp.eq.s32.totalorder %s30, 0
      %p246 = por %p244, %p245
      %s247 = ssub.s32 %s32, %s39
      %p248 = scmp.eq.s32.totalorder %s247, 0
      %s250 = sadd.s32 %s249, 1
      %s251 = scalar_select %p248, %s249, %s250
      %p254 = pneg %p248
      %p255 = scmp.eq.s32.totalorder %s24, 3
      %p256 = por %p254, %p255
      %p257 = scmp.ne.s32.totalorder %s249, %s252
      %p258 = scmp.eq.s32.totalorder %s24, 0
      %p259 = por %p257, %p258
      %p260 = scmp.ne.s32.totalorder %s249, %s252
      %p261 = scmp.eq.s32.totalorder %s29, 3
      %p262 = por %p260, %p261
      %p263 = scmp.ne.s32.totalorder %s252, %s253
      %p264 = scmp.eq.s32.totalorder %s29, 0
      %p265 = por %p263, %p264
      %p266 = scmp.ne.s32.totalorder %s252, %s253
      %p267 = scmp.eq.s32.totalorder %s30, 3
      %p268 = por %p266, %p267
      %p270 = scmp.ne.s32.totalorder %s253, %s269
      %p271 = scmp.eq.s32.totalorder %s30, 0
      %p272 = por %p270, %p271
      %s273 = ssub.s32 %s32, %s39
      %p274 = scmp.eq.s32.totalorder %s273, 0
      %s276 = sadd.s32 %s275, 1
      %s277 = scalar_select %p274, %s275, %s276
      %p280 = pneg %p274
      %p281 = scmp.eq.s32.totalorder %s24, 3
      %p282 = por %p280, %p281
      %p283 = scmp.ne.s32.totalorder %s275, %s278
      %p284 = scmp.eq.s32.totalorder %s24, 0
      %p285 = por %p283, %p284
      %p286 = scmp.ne.s32.totalorder %s275, %s278
      %p287 = scmp.eq.s32.totalorder %s29, 3
      %p288 = por %p286, %p287
      %p289 = scmp.ne.s32.totalorder %s278, %s279
      %p290 = scmp.eq.s32.totalorder %s29, 0
      %p291 = por %p289, %p290
      %p292 = scmp.ne.s32.totalorder %s278, %s279
      %p293 = scmp.eq.s32.totalorder %s30, 3
      %p294 = por %p292, %p293
      %p296 = scmp.ne.s32.totalorder %s279, %s295
      %p297 = scmp.eq.s32.totalorder %s30, 0
      %p298 = por %p296, %p297
      %s299 = ssub.s32 %s32, %s39
      %p300 = scmp.eq.s32.totalorder %s299, 0
      %s302 = sadd.s32 %s301, 1
      %s303 = scalar_select %p300, %s301, %s302
      %p306 = pneg %p300
      %p307 = scmp.eq.s32.totalorder %s24, 3
      %p308 = por %p306, %p307
      %p309 = scmp.ne.s32.totalorder %s301, %s304
      %p310 = scmp.eq.s32.totalorder %s24, 0
      %p311 = por %p309, %p310
      %p312 = scmp.ne.s32.totalorder %s301, %s304
      %p313 = scmp.eq.s32.totalorder %s29, 3
      %p314 = por %p312, %p313
      %p315 = scmp.ne.s32.totalorder %s304, %s305
      %p316 = scmp.eq.s32.totalorder %s29, 0
      %p317 = por %p315, %p316
      %p318 = scmp.ne.s32.totalorder %s304, %s305
      %p319 = scmp.eq.s32.totalorder %s30, 3
      %p320 = por %p318, %p319
      %p322 = scmp.ne.s32.totalorder %s305, %s321
      %p323 = scmp.eq.s32.totalorder %s30, 0
      %p324 = por %p322, %p323
      %s325 = ssub.s32 %s32, %s39
      %p326 = scmp.eq.s32.totalorder %s325, 0
      %s328 = sadd.s32 %s327, 1
      %s329 = scalar_select %p326, %s327, %s328
      %p332 = pneg %p326
      %p333 = scmp.eq.s32.totalorder %s24, 3
      %p334 = por %p332, %p333
      %p335 = scmp.ne.s32.totalorder %s327, %s330
      %p336 = scmp.eq.s32.totalorder %s24, 0
      %p337 = por %p335, %p336
      %p338 = scmp.ne.s32.totalorder %s327, %s330
      %p339 = scmp.eq.s32.totalorder %s29, 3
      %p340 = por %p338, %p339
      %p341 = scmp.ne.s32.totalorder %s330, %s331
      %p342 = scmp.eq.s32.totalorder %s29, 0
      %p343 = por %p341, %p342
      %p344 = scmp.ne.s32.totalorder %s330, %s331
      %p345 = scmp.eq.s32.totalorder %s30, 3
      %p346 = por %p344, %p345
      %p348 = scmp.ne.s32.totalorder %s331, %s347
      %p349 = scmp.eq.s32.totalorder %s30, 0
      %p350 = por %p348, %p349
      %s351 = ssub.s32 %s32, %s39
      %p352 = scmp.eq.s32.totalorder %s351, 0
      %s354 = sadd.s32 %s353, 1
      %s355 = scalar_select %p352, %s353, %s354
      %p358 = pneg %p352
      %p359 = scmp.eq.s32.totalorder %s24, 3
      %p360 = por %p358, %p359
      %p361 = scmp.ne.s32.totalorder %s353, %s356
      %p362 = scmp.eq.s32.totalorder %s24, 0
      %p363 = por %p361, %p362
      %p364 = scmp.ne.s32.totalorder %s353, %s356
      %p365 = scmp.eq.s32.totalorder %s29, 3
      %p366 = por %p364, %p365
      %p367 = scmp.ne.s32.totalorder %s356, %s357
      %p368 = scmp.eq.s32.totalorder %s29, 0
      %p369 = por %p367, %p368
      %p370 = scmp.ne.s32.totalorder %s356, %s357
      %p371 = scmp.eq.s32.totalorder %s30, 3
      %p372 = por %p370, %p371
      %p374 = scmp.ne.s32.totalorder %s357, %s373
      %p375 = scmp.eq.s32.totalorder %s30, 0
      %p376 = por %p374, %p375
      %s377 = ssub.s32 %s32, %s39
      %p378 = scmp.eq.s32.totalorder %s377, 0
      %s380 = sadd.s32 %s379, 1
      %s381 = scalar_select %p378, %s379, %s380
      %p384 = pneg %p378
      %p385 = scmp.eq.s32.totalorder %s24, 3
      %p386 = por %p384, %p385
      %p387 = scmp.ne.s32.totalorder %s379, %s382
      %p388 = scmp.eq.s32.totalorder %s24, 0
      %p389 = por %p387, %p388
      %p390 = scmp.ne.s32.totalorder %s379, %s382
      %p391 = scmp.eq.s32.totalorder %s29, 3
      %p392 = por %p390, %p391
      %p393 = scmp.ne.s32.totalorder %s382, %s383
      %p394 = scmp.eq.s32.totalorder %s29, 0
      %p395 = por %p393, %p394
      %p396 = scmp.ne.s32.totalorder %s382, %s383
      %p397 = scmp.eq.s32.totalorder %s30, 3
      %p398 = por %p396, %p397
      %p400 = scmp.ne.s32.totalorder %s383, %s399
      %p401 = scmp.eq.s32.totalorder %s30, 0
      %p402 = por %p400, %p401
      %s404 = sadd.s32 %s403, 1
      %p407 = scmp.eq.s32.totalorder %s24, 3
      %p408 = scmp.ne.s32.totalorder %s403, %s405
      %p409 = scmp.eq.s32.totalorder %s24, 0
      %p410 = por %p408, %p409
      %p411 = scmp.ne.s32.totalorder %s403, %s405
      %p412 = scmp.eq.s32.totalorder %s29, 3
      %p413 = por %p411, %p412
      %p414 = scmp.ne.s32.totalorder %s405, %s406
      %p415 = scmp.eq.s32.totalorder %s29, 0
      %p416 = por %p414, %p415
      %p417 = scmp.ne.s32.totalorder %s405, %s406
      %p418 = scmp.eq.s32.totalorder %s30, 3
      %p419 = por %p417, %p418
      %p421 = scmp.ne.s32.totalorder %s406, %s420
      %p422 = scmp.eq.s32.totalorder %s30, 0
      %p423 = por %p421, %p422
      %s424 = ssub.s32 %s31, %s43
      %p425 = scmp.eq.s32.totalorder %s424, 0
      %s427 = sadd.s32 %s426, 1
      %s428 = scalar_select %p425, %s426, %s427
      %p431 = pneg %p425
      %p432 = scmp.eq.s32.totalorder %s24, 3
      %p433 = por %p431, %p432
      %p434 = scmp.ne.s32.totalorder %s426, %s429
      %p435 = scmp.eq.s32.totalorder %s24, 0
      %p436 = por %p434, %p435
      %p437 = scmp.ne.s32.totalorder %s426, %s429
      %p438 = scmp.eq.s32.totalorder %s29, 3
      %p439 = por %p437, %p438
      %p440 = scmp.ne.s32.totalorder %s429, %s430
      %p441 = scmp.eq.s32.totalorder %s29, 0
      %p442 = por %p440, %p441
      %p443 = scmp.ne.s32.totalorder %s429, %s430
      %p444 = scmp.eq.s32.totalorder %s30, 3
      %p445 = por %p443, %p444
      %p447 = scmp.ne.s32.totalorder %s430, %s446
      %p448 = scmp.eq.s32.totalorder %s30, 0
      %p449 = por %p447, %p448
      %p450 = scmp.le.s32.totalorder 1, %s24
      %p451 = scmp.lt.s32.totalorder %s24, 5
      %p452 = pnand %p450, %p451
      %p453 = pneg %p452
      // Predicated region
      $region9: #{tpu_custom_call.1} parent=5 // pred_check
        _
      $region10: #{tpu_custom_call.1} parent=5 // pred_check_branch
        %455 = sbr.rel (%p452) target = $region12
      $region11: #{tpu_custom_call.1} parent=5 // pred_region
        %s456 = ssub.s32 %s24, 1
        // Predicated region
        $region13: #{tpu_custom_call.1} parent=11 // pred_check
          %p457 = pneg %p83
        $region14: #{tpu_custom_call.1} parent=11 // pred_check_branch
          %459 = sbr.rel (%p457) target = $region16
        $region15: #{tpu_custom_call.1} parent=11 // pred_region
          _
        $region16: #{tpu_custom_call.1} parent=11 // pred_fallthru
          _
        // Predicated region
        $region17: #{tpu_custom_call.1} parent=11 // pred_check
          %p460 = pneg %p416
        $region18: #{tpu_custom_call.1} parent=11 // pred_check_branch
          %462 = sbr.rel (%p460) target = $region20
        $region19: #{tpu_custom_call.1} parent=11 // pred_region
          _
        $region20: #{tpu_custom_call.1} parent=11 // pred_fallthru
          _
      $region12: #{tpu_custom_call.1} parent=5 // pred_fallthru
        _
      %p463 = scmp.lt.s32.totalorder %s24, 4
      // Predicated region
      $region21: #{tpu_custom_call.1} parent=5 // pred_check
        %p464 = pneg %p463
      $region22: #{tpu_custom_call.1} parent=5 // pred_check_branch
        %466 = sbr.rel (%p464) target = $region24
      $region23: #{tpu_custom_call.1} parent=5 // pred_region
        // Predicated region
        $region25: #{tpu_custom_call.1} parent=23 // pred_check
          %p467 = pneg %p56
        $region26: #{tpu_custom_call.1} parent=23 // pred_check_branch
          %469 = sbr.rel (%p467) target = $region28
        $region27: #{tpu_custom_call.1} parent=23 // pred_region
          %p470 = scmp.lt.s32.totalorder %s31, 1
          %s471 = scalar_select %p470, %s31, 1
          %s472 = smul.addr %s471, 8
          %s473 = scalar_lea.vmem %s0, %s472
        $region28: #{tpu_custom_call.1} parent=23 // pred_fallthru
          _
        // Predicated region
        $region29: #{tpu_custom_call.1} parent=23 // pred_check
          %p474 = pneg %p103
        $region30: #{tpu_custom_call.1} parent=23 // pred_check_branch
          %476 = sbr.rel (%p474) target = $region32
        $region31: #{tpu_custom_call.1} parent=23 // pred_region
          %p477 = scmp.lt.s32.totalorder %s32, 1
          %s478 = scalar_select %p477, %s32, 1
          %s479 = scalar_lea.vmem %s2, %s478
        $region32: #{tpu_custom_call.1} parent=23 // pred_fallthru
          _
        // Predicated region
        $region33: #{tpu_custom_call.1} parent=23 // pred_check
          %p480 = pneg %p129
        $region34: #{tpu_custom_call.1} parent=23 // pred_check_branch
          %482 = sbr.rel (%p480) target = $region36
        $region35: #{tpu_custom_call.1} parent=23 // pred_region
          %p483 = scmp.lt.s32.totalorder %s32, 1
          %s484 = scalar_select %p483, %s32, 1
          %s485 = scalar_lea.vmem %s3, %s484
        $region36: #{tpu_custom_call.1} parent=23 // pred_fallthru
          _
        // Predicated region
        $region37: #{tpu_custom_call.1} parent=23 // pred_check
          %p486 = pneg %p155
        $region38: #{tpu_custom_call.1} parent=23 // pred_check_branch
          %488 = sbr.rel (%p486) target = $region40
        $region39: #{tpu_custom_call.1} parent=23 // pred_region
          %p489 = scmp.lt.s32.totalorder %s32, 1
          %s490 = scalar_select %p489, %s32, 1
          %s491 = smul.addr %s490, 16
          %s492 = smul.addr %s491, 4
          %s493 = scalar_lea.vmem %s4, %s492
        $region40: #{tpu_custom_call.1} parent=23 // pred_fallthru
          _
        // Predicated region
        $region41: #{tpu_custom_call.1} parent=23 // pred_check
          %p494 = pneg %p181
        $region42: #{tpu_custom_call.1} parent=23 // pred_check_branch
          %496 = sbr.rel (%p494) target = $region44
        $region43: #{tpu_custom_call.1} parent=23 // pred_region
          %p497 = scmp.lt.s32.totalorder %s32, 1
          %s498 = scalar_select %p497, %s32, 1
          %s499 = smul.addr %s498, 16
          %s500 = smul.addr %s499, 4
          %s501 = scalar_lea.vmem %s5, %s500
        $region44: #{tpu_custom_call.1} parent=23 // pred_fallthru
          _
        // Predicated region
        $region45: #{tpu_custom_call.1} parent=23 // pred_check
          %p502 = pneg %p207
        $region46: #{tpu_custom_call.1} parent=23 // pred_check_branch
          %504 = sbr.rel (%p502) target = $region48
        $region47: #{tpu_custom_call.1} parent=23 // pred_region
          %p505 = scmp.lt.s32.totalorder %s32, 1
          %s506 = scalar_select %p505, %s32, 1
          %s507 = smul.addr %s506, 16
          %s508 = smul.addr %s507, 4
          %s509 = scalar_lea.vmem %s6, %s508
        $region48: #{tpu_custom_call.1} parent=23 // pred_fallthru
          _
        // Predicated region
        $region49: #{tpu_custom_call.1} parent=23 // pred_check
          %p510 = pneg %p233
        $region50: #{tpu_custom_call.1} parent=23 // pred_check_branch
          %512 = sbr.rel (%p510) target = $region52
        $region51: #{tpu_custom_call.1} parent=23 // pred_region
          %p513 = scmp.lt.s32.totalorder %s32, 1
          %s514 = scalar_select %p513, %s32, 1
          %s515 = smul.addr %s514, 4
          %s516 = smul.addr %s515, 4
          %s517 = scalar_lea.vmem %s7, %s516
        $region52: #{tpu_custom_call.1} parent=23 // pred_fallthru
          _
        // Predicated region
        $region53: #{tpu_custom_call.1} parent=23 // pred_check
          %p518 = pneg %p259
        $region54: #{tpu_custom_call.1} parent=23 // pred_check_branch
          %520 = sbr.rel (%p518) target = $region56
        $region55: #{tpu_custom_call.1} parent=23 // pred_region
          %p521 = scmp.lt.s32.totalorder %s32, 1
          %s522 = scalar_select %p521, %s32, 1
          %s523 = scalar_lea.vmem %s8, %s522
        $region56: #{tpu_custom_call.1} parent=23 // pred_fallthru
          _
        // Predicated region
        $region57: #{tpu_custom_call.1} parent=23 // pred_check
          %p524 = pneg %p285
        $region58: #{tpu_custom_call.1} parent=23 // pred_check_branch
          %526 = sbr.rel (%p524) target = $region60
        $region59: #{tpu_custom_call.1} parent=23 // pred_region
          %p527 = scmp.lt.s32.totalorder %s32, 1
          %s528 = scalar_select %p527, %s32, 1
          %s529 = scalar_lea.vmem %s9, %s528
        $region60: #{tpu_custom_call.1} parent=23 // pred_fallthru
          _
        // Predicated region
        $region61: #{tpu_custom_call.1} parent=23 // pred_check
          %p530 = pneg %p311
        $region62: #{tpu_custom_call.1} parent=23 // pred_check_branch
          %532 = sbr.rel (%p530) target = $region64
        $region63: #{tpu_custom_call.1} parent=23 // pred_region
          %p533 = scmp.lt.s32.totalorder %s32, 1
          %s534 = scalar_select %p533, %s32, 1
          %s535 = smul.addr %s534, 4
          %s536 = smul.addr %s535, 4
          %s537 = scalar_lea.vmem %s10, %s536
        $region64: #{tpu_custom_call.1} parent=23 // pred_fallthru
          _
        // Predicated region
        $region65: #{tpu_custom_call.1} parent=23 // pred_check
          %p538 = pneg %p337
        $region66: #{tpu_custom_call.1} parent=23 // pred_check_branch
          %540 = sbr.rel (%p538) target = $region68
        $region67: #{tpu_custom_call.1} parent=23 // pred_region
          %p541 = scmp.lt.s32.totalorder %s32, 1
          %s542 = scalar_select %p541, %s32, 1
          %s543 = scalar_lea.vmem %s11, %s542
        $region68: #{tpu_custom_call.1} parent=23 // pred_fallthru
          _
        // Predicated region
        $region69: #{tpu_custom_call.1} parent=23 // pred_check
          %p544 = pneg %p363
        $region70: #{tpu_custom_call.1} parent=23 // pred_check_branch
          %546 = sbr.rel (%p544) target = $region72
        $region71: #{tpu_custom_call.1} parent=23 // pred_region
          %p547 = scmp.lt.s32.totalorder %s32, 1
          %s548 = scalar_select %p547, %s32, 1
          %s549 = smul.addr %s548, 16
          %s550 = smul.addr %s549, 4
          %s551 = scalar_lea.vmem %s12, %s550
        $region72: #{tpu_custom_call.1} parent=23 // pred_fallthru
          _
        // Predicated region
        $region73: #{tpu_custom_call.1} parent=23 // pred_check
          %p552 = pneg %p389
        $region74: #{tpu_custom_call.1} parent=23 // pred_check_branch
          %554 = sbr.rel (%p552) target = $region76
        $region75: #{tpu_custom_call.1} parent=23 // pred_region
          %p555 = scmp.lt.s32.totalorder %s32, 1
          %s556 = scalar_select %p555, %s32, 1
          %s557 = scalar_lea.vmem %s13, %s556
        $region76: #{tpu_custom_call.1} parent=23 // pred_fallthru
          _
      $region24: #{tpu_custom_call.1} parent=5 // pred_fallthru
        _
      %p558 = scmp.le.s32.totalorder 1, %s24
      %p559 = scmp.lt.s32.totalorder %s24, 5
      %p560 = pnand %p558, %p559
      %p561 = pneg %p560
      // Predicated region
      $region77: #{tpu_custom_call.1} parent=5 // pred_check
        _
      $region78: #{tpu_custom_call.1} parent=5 // pred_check_branch
        %563 = sbr.rel (%p560) target = $region80
      $region79: #{tpu_custom_call.1} parent=5 // pred_region
        %s564 = ssub.s32 %s24, 1
        %p565 = scmp.lt.s32.totalorder %s33, 1
        %s566 = scalar_select %p565, %s33, 1
        %s567 = smul.addr %s566, 8
        %s568 = scalar_lea.vmem %s0, %s567
        %p569 = pneg %p62
        %p570 = pneg %p59
        %p571 = pneg %p83
        %p572 = pneg %p80
        %p573 = scmp.lt.s32.totalorder %s34, 1
        %s574 = scalar_select %p573, %s34, 1
        %s575 = scalar_lea.vmem %s2, %s574
        %p576 = pneg %p109
        %p577 = pneg %p106
        %p578 = scmp.lt.s32.totalorder %s34, 1
        %s579 = scalar_select %p578, %s34, 1
        %s580 = scalar_lea.vmem %s3, %s579
        %p581 = pneg %p135
        %p582 = pneg %p132
        %p583 = scmp.lt.s32.totalorder %s34, 1
        %s584 = scalar_select %p583, %s34, 1
        %s585 = smul.addr %s584, 16
        %s586 = smul.addr %s585, 4
        %s587 = scalar_lea.vmem %s4, %s586
        %p588 = pneg %p161
        %p589 = pneg %p158
        %p590 = scmp.lt.s32.totalorder %s34, 1
        %s591 = scalar_select %p590, %s34, 1
        %s592 = smul.addr %s591, 16
        %s593 = smul.addr %s592, 4
        %s594 = scalar_lea.vmem %s5, %s593
        %p595 = pneg %p187
        %p596 = pneg %p184
        %p597 = scmp.lt.s32.totalorder %s34, 1
        %s598 = scalar_select %p597, %s34, 1
        %s599 = smul.addr %s598, 16
        %s600 = smul.addr %s599, 4
        %s601 = scalar_lea.vmem %s6, %s600
        %p602 = pneg %p213
        %p603 = pneg %p210
        %p604 = scmp.lt.s32.totalorder %s34, 1
        %s605 = scalar_select %p604, %s34, 1
        %s606 = smul.addr %s605, 4
        %s607 = smul.addr %s606, 4
        %s608 = scalar_lea.vmem %s7, %s607
        %p609 = pneg %p239
        %p610 = pneg %p236
        %p611 = scmp.lt.s32.totalorder %s34, 1
        %s612 = scalar_select %p611, %s34, 1
        %s613 = scalar_lea.vmem %s8, %s612
        %p614 = pneg %p265
        %p615 = pneg %p262
        %p616 = scmp.lt.s32.totalorder %s34, 1
        %s617 = scalar_select %p616, %s34, 1
        %s618 = scalar_lea.vmem %s9, %s617
        %p619 = pneg %p291
        %p620 = pneg %p288
        %p621 = scmp.lt.s32.totalorder %s34, 1
        %s622 = scalar_select %p621, %s34, 1
        %s623 = smul.addr %s622, 4
        %s624 = smul.addr %s623, 4
        %s625 = scalar_lea.vmem %s10, %s624
        %p626 = pneg %p317
        %p627 = pneg %p314
        %p628 = scmp.lt.s32.totalorder %s34, 1
        %s629 = scalar_select %p628, %s34, 1
        %s630 = scalar_lea.vmem %s11, %s629
        %p631 = pneg %p343
        %p632 = pneg %p340
        %p633 = scmp.lt.s32.totalorder %s34, 1
        %s634 = scalar_select %p633, %s34, 1
        %s635 = smul.addr %s634, 16
        %s636 = smul.addr %s635, 4
        %s637 = scalar_lea.vmem %s12, %s636
        %p638 = pneg %p369
        %p639 = pneg %p366
        %p640 = scmp.lt.s32.totalorder %s34, 1
        %s641 = scalar_select %p640, %s34, 1
        %s642 = scalar_lea.vmem %s13, %s641
        %p643 = pneg %p395
        %p644 = pneg %p392
        %p645 = pneg %p416
        %p646 = pneg %p413
        %p647 = pneg %p442
        %p648 = pneg %p439
        %s649 = sand.u32 %s429, 1
        %s650 = scalar_lea.sflag [#allocation4], %s649
        %s651 = sand.u32 %s429, 1
        %s652 = smul.addr %s651, 8
        %s653 = scalar_lea.vmem [#allocation3], %s652
        %p654 = scmp.lt.s32.totalorder %s33, 1
        %s655 = scalar_select %p654, %s33, 1
        %s656 = smul.addr %s655, 8
        %s657 = scalar_lea.vmem %s0, %s656
        %p658 = scmp.lt.s32.totalorder %s34, 1
        %s659 = scalar_select %p658, %s34, 1
        %s660 = scalar_lea.vmem %s2, %s659
        %p661 = scmp.lt.s32.totalorder %s34, 1
        %s662 = scalar_select %p661, %s34, 1
        %s663 = scalar_lea.vmem %s3, %s662
        %p664 = scmp.lt.s32.totalorder %s34, 1
        %s665 = scalar_select %p664, %s34, 1
        %s666 = smul.addr %s665, 16
        %s667 = smul.addr %s666, 4
        %s668 = scalar_lea.vmem %s4, %s667
        %p669 = scmp.lt.s32.totalorder %s34, 1
        %s670 = scalar_select %p669, %s34, 1
        %s671 = smul.addr %s670, 16
        %s672 = smul.addr %s671, 4
        %s673 = scalar_lea.vmem %s5, %s672
        %p674 = scmp.lt.s32.totalorder %s34, 1
        %s675 = scalar_select %p674, %s34, 1
        %s676 = smul.addr %s675, 16
        %s677 = smul.addr %s676, 4
        %s678 = scalar_lea.vmem %s6, %s677
        %p679 = scmp.lt.s32.totalorder %s34, 1
        %s680 = scalar_select %p679, %s34, 1
        %s681 = smul.addr %s680, 4
        %s682 = smul.addr %s681, 4
        %s683 = scalar_lea.vmem %s7, %s682
        %p684 = scmp.lt.s32.totalorder %s34, 1
        %s685 = scalar_select %p684, %s34, 1
        %s686 = scalar_lea.vmem %s8, %s685
        %p687 = scmp.lt.s32.totalorder %s34, 1
        %s688 = scalar_select %p687, %s34, 1
        %s689 = scalar_lea.vmem %s9, %s688
        %p690 = scmp.lt.s32.totalorder %s34, 1
        %s691 = scalar_select %p690, %s34, 1
        %s692 = smul.addr %s691, 4
        %s693 = smul.addr %s692, 4
        %s694 = scalar_lea.vmem %s10, %s693
        %p695 = scmp.lt.s32.totalorder %s34, 1
        %s696 = scalar_select %p695, %s34, 1
        %s697 = scalar_lea.vmem %s11, %s696
        %p698 = scmp.lt.s32.totalorder %s34, 1
        %s699 = scalar_select %p698, %s34, 1
        %s700 = smul.addr %s699, 16
        %s701 = smul.addr %s700, 4
        %s702 = scalar_lea.vmem %s12, %s701
        %p703 = scmp.lt.s32.totalorder %s34, 1
        %s704 = scalar_select %p703, %s34, 1
        %s705 = scalar_lea.vmem %s13, %s704
        %p707 = scmp.eq.s32.totalorder %s34, 0
        // Predicated region
        $region81: #{tpu_custom_call.1} parent=79 // pred_check
          %p708 = pneg %p707
        $region82: #{tpu_custom_call.1} parent=79 // pred_check_branch
          %710 = sbr.rel (%p708) target = $region84
        $region83: #{tpu_custom_call.1} parent=79 // pred_region
          %v711 = vld [vmem:[%s657] sm:$0xff]
          %v712 = vpack.c.bf16 %v711, %v711
          %v713 = vld [vmem:[%s1] sm:$0xf]
          %v714 = vld [vmem:[%s1 + $0x4] sm:$0xf]
          %v717 = vunpack.c.l.b16 %v713
          %v718 = vunpack.c.l.b16 %v714
          %v719 = vpack.c.b16 %v718, %v717
          %vm721 = vcmask 130048
          %v723 = vsel %vm721, %v712, 0
          %725 = vmatpush.bf16.msra.mxu0 0
          %726 = vmatpush.bf16.msra.mxu0 0
          %727 = vmatpush.bf16.msra.mxu0 0
          %728 = vmatpush.bf16.msra.mxu0 0
          %729 = vmatpush.bf16.msra.mxu0 0
          %730 = vmatpush.bf16.msra.mxu0 0
          %731 = vmatpush.bf16.msra.mxu0 0
          %732 = vmatpush.bf16.msra.mxu0 %v719
          %733 = vmatmul.bf16.gmra.mxu0 %v723
          %v734 = vpop.f32.mrf.mxu0
          %v735 = vadd.f32 0.0, %v734
          %v736 = vpop.f32.mrf.mxu0
          %737 = vdwg.mxu0
          %vm738 = vcmask 261120
          %739 = vst.msk [vmem:[#allocation2] sm:$0xff] %vm738, %v735
        $region84: #{tpu_custom_call.1} parent=79 // pred_fallthru
          _
        %v740 = vld [vmem:[#allocation2] sm:$0xff]
        %v741 = vld [vmem:[%s660] sm:$0x1]
        %v742 = vld [vmem:[%s663] sm:$0x1]
        %vm743 = vcmask 261120
        %v744 = vsel %vm743, %v740, 0.0
        %745 = vadd.xlane.f32.xlu0 %v744
        %v746 = vpop.xlane.xlu0 %745
        %v747 = vrcp.pop 32.0
        %v748 = vmul.f32 32.0, %v747
        %v749 = vsub.f32 1.0, %v748
        %v750 = vmul.f32 %v747, %v749
        %v751 = vadd.f32 %v747, %v750
        %vm752 = vweird.f32 %v747
        %v753 = vsel %vm752, %v747, %v751
        %v754 = vmul.f32 %v746, %v753
        %v755 = vsub.f32 %v740, %v754
        %v756 = vmul.f32 %v755, %v755
        %v757 = vsel %vm743, %v756, 0.0
        %758 = vadd.xlane.f32.xlu0 %v757
        %v759 = vpop.xlane.xlu0 %758
        %v760 = vmul.f32 %v759, %v753
        %v761 = vadd.f32 %v760, 1e-05
        %v762 = vrsqrt.pop %v761
        %v763 = vmul.f32 %v762, %v761
        %v764 = vmul.f32 %v763, %v762
        %v765 = vmul.f32 0.5, %v764
        %v766 = vsub.f32 1.5, %v765
        %v767 = vmul.f32 %v762, %v766
        %vm768 = vweird.f32 %v761
        %vm769 = vweird.f32 %v762
        %vm770 = vmor %vm768, %vm769
        %v771 = vsel %vm770, %v762, %v767
        %v772 = vmul.f32 %v755, %v771
        %v773 = vunpack.c.l.bf16 %v741
        %v774 = vperm.slane %v773, 0
        %v775 = vmul.f32 %v772, %v774
        %v776 = vunpack.c.l.bf16 %v742
        %v777 = vperm.slane %v776, 0
        %v778 = vadd.f32 %v775, %v777
        %v779 = vpack.c.bf16 %v778, %v778
        %v780 = vld [vmem:[%s668] sm:$0xf]
        %v781 = vld [vmem:[%s668 + $0x4] sm:$0xf]
        %v782 = vld [vmem:[%s668 + $0x8] sm:$0xf]
        %v783 = vld [vmem:[%s668 + $0xc] sm:$0xf]
        %v788 = vunpack.c.l.b16 %v780
        %v789 = vunpack.c.l.b16 %v781
        %v790 = vunpack.c.l.b16 %v782
        %v791 = vunpack.c.l.b16 %v783
        %v792 = vpack.c.b16 %v789, %v788
        %v793 = vpack.c.b16 %v791, %v790
        %v797 = vsel %vm743, %v779, 0
        %799 = vmatpush.bf16.msra.mxu0 0
        %800 = vmatpush.bf16.msra.mxu0 0
        %801 = vmatpush.bf16.msra.mxu0 0
        %802 = vmatpush.bf16.msra.mxu0 0
        %803 = vmatpush.bf16.msra.mxu0 0
        %804 = vmatpush.bf16.msra.mxu0 0
        %805 = vmatpush.bf16.msra.mxu0 %v793
        %806 = vmatpush.bf16.msra.mxu0 %v792
        %807 = vmatmul.bf16.gmra.mxu0 %v797
        %v808 = vpop.f32.mrf.mxu0
        %v809 = vadd.f32 0.0, %v808
        %v810 = vpop.f32.mrf.mxu0
        %811 = vdwg.mxu0
        %v812 = vld [vmem:[%s673] sm:$0xf]
        %v813 = vld [vmem:[%s673 + $0x4] sm:$0xf]
        %v814 = vld [vmem:[%s673 + $0x8] sm:$0xf]
        %v815 = vld [vmem:[%s673 + $0xc] sm:$0xf]
        %v820 = vunpack.c.l.b16 %v812
        %v821 = vunpack.c.l.b16 %v813
        %v822 = vunpack.c.l.b16 %v814
        %v823 = vunpack.c.l.b16 %v815
        %v824 = vpack.c.b16 %v821, %v820
        %v825 = vpack.c.b16 %v823, %v822
        %828 = vmatpush.bf16.msra.mxu0 0
        %829 = vmatpush.bf16.msra.mxu0 0
        %830 = vmatpush.bf16.msra.mxu0 0
        %831 = vmatpush.bf16.msra.mxu0 0
        %832 = vmatpush.bf16.msra.mxu0 0
        %833 = vmatpush.bf16.msra.mxu0 0
        %834 = vmatpush.bf16.msra.mxu0 %v825
        %835 = vmatpush.bf16.msra.mxu0 %v824
        %836 = vmatmul.bf16.gmra.mxu0 %v797
        %v837 = vpop.f32.mrf.mxu0
        %v838 = vadd.f32 0.0, %v837
        %v839 = vpop.f32.mrf.mxu0
        %840 = vdwg.mxu0
        %v841 = vld [vmem:[%s678] sm:$0xf]
        %v842 = vld [vmem:[%s678 + $0x4] sm:$0xf]
        %v843 = vld [vmem:[%s678 + $0x8] sm:$0xf]
        %v844 = vld [vmem:[%s678 + $0xc] sm:$0xf]
        %v849 = vunpack.c.l.b16 %v841
        %v850 = vunpack.c.l.b16 %v842
        %v851 = vunpack.c.l.b16 %v843
        %v852 = vunpack.c.l.b16 %v844
        %v853 = vpack.c.b16 %v850, %v849
        %v854 = vpack.c.b16 %v852, %v851
        %857 = vmatpush.bf16.msra.mxu0 0
        %858 = vmatpush.bf16.msra.mxu0 0
        %859 = vmatpush.bf16.msra.mxu0 0
        %860 = vmatpush.bf16.msra.mxu0 0
        %861 = vmatpush.bf16.msra.mxu0 0
        %862 = vmatpush.bf16.msra.mxu0 0
        %863 = vmatpush.bf16.msra.mxu0 %v854
        %864 = vmatpush.bf16.msra.mxu0 %v853
        %865 = vmatmul.bf16.gmra.mxu0 %v797
        %v866 = vpop.f32.mrf.mxu0
        %v867 = vadd.f32 0.0, %v866
        %v868 = vpop.f32.mrf.mxu0
        %869 = vdwg.mxu0
        %v870 = vpack.c.bf16 %v809, %v809
        %v871 = vpack.c.bf16 %v838, %v838
        %vm872 = vcmask 64512
        %v874 = vsel %vm872, %v870, 0
        %v877 = vsel %vm872, %v871, 0
        %879 = vmatpush.bf16.xpose.msra.mxu0 0
        %880 = vmatpush.bf16.xpose.msra.mxu0 0
        %881 = vmatpush.bf16.xpose.msra.mxu0 0
        %882 = vmatpush.bf16.xpose.msra.mxu0 0
        %883 = vmatpush.bf16.xpose.msra.mxu0 0
        %884 = vmatpush.bf16.xpose.msra.mxu0 0
        %885 = vmatpush.bf16.xpose.msra.mxu0 0
        %886 = vmatpush.bf16.xpose.msra.mxu0 %v877
        %887 = vmatmul.bf16.gmra.mxu0 %v874
        %v888 = vpop.f32.mrf.mxu0
        %v889 = vadd.f32 0.0, %v888
        %v890 = vpop.f32.mrf.mxu0
        %891 = vdwg.mxu0
        %v892 = vmul.f32 %v889, 0.35355338
        %v893 = vsel %vm872, %v892, -inf
        %894 = vmax.xlane.f32.xlu0 %v893
        %v895 = vpop.xlane.xlu0 %894
        %v896 = vsub.f32 %v892, %v895
        %v897 = vmul.f32 %v896, 1.442695
        %v898 = vpow.pop %v897
        %v899 = vsel %vm872, %v898, 0.0
        %900 = vadd.xlane.f32.xlu0 %v899
        %v901 = vpop.xlane.xlu0 %900
        %v902 = vrcp.pop %v901
        %v903 = vmul.f32 %v898, %v902
        %v904 = vpack.c.bf16 %v903, %v903
        %v905 = vpack.c.bf16 %v867, %v867
        %v907 = vsel %vm872, %v904, 0
        %vm909 = vcmask 1043456
        %v911 = vsel %vm909, %v905, 0
        %913 = vmatpush.bf16.msra.mxu0 0
        %914 = vmatpush.bf16.msra.mxu0 0
        %915 = vmatpush.bf16.msra.mxu0 0
        %916 = vmatpush.bf16.msra.mxu0 0
        %917 = vmatpush.bf16.msra.mxu0 0
        %918 = vmatpush.bf16.msra.mxu0 0
        %919 = vmatpush.bf16.msra.mxu0 0
        %920 = vmatpush.bf16.msra.mxu0 %v911
        %921 = vmatmul.bf16.gmra.mxu0 %v907
        %v922 = vpop.f32.mrf.mxu0
        %v923 = vadd.f32 0.0, %v922
        %v924 = vpop.f32.mrf.mxu0
        %925 = vdwg.mxu0
        %v926 = vpack.c.bf16 %v923, %v923
        %v927 = vld [vmem:[%s683] sm:$0xf]
        %s928 = scalar_lea.vmem %s668, 16
        %v929 = vld [vmem:[%s928] sm:$0xf]
        %v930 = vld [vmem:[%s928 + $0x4] sm:$0xf]
        %v931 = vld [vmem:[%s928 + $0x8] sm:$0xf]
        %v932 = vld [vmem:[%s928 + $0xc] sm:$0xf]
        %v937 = vunpack.c.l.b16 %v929
        %v938 = vunpack.c.l.b16 %v930
        %v939 = vunpack.c.l.b16 %v931
        %v940 = vunpack.c.l.b16 %v932
        %v941 = vpack.c.b16 %v938, %v937
        %v942 = vpack.c.b16 %v940, %v939
        %945 = vmatpush.bf16.msra.mxu0 0
        %946 = vmatpush.bf16.msra.mxu0 0
        %947 = vmatpush.bf16.msra.mxu0 0
        %948 = vmatpush.bf16.msra.mxu0 0
        %949 = vmatpush.bf16.msra.mxu0 0
        %950 = vmatpush.bf16.msra.mxu0 0
        %951 = vmatpush.bf16.msra.mxu0 %v942
        %952 = vmatpush.bf16.msra.mxu0 %v941
        %953 = vmatmul.bf16.gmra.mxu0 %v797
        %v954 = vpop.f32.mrf.mxu0
        %v955 = vadd.f32 0.0, %v954
        %v956 = vpop.f32.mrf.mxu0
        %957 = vdwg.mxu0
        %s958 = scalar_lea.vmem %s673, 16
        %v959 = vld [vmem:[%s958] sm:$0xf]
        %v960 = vld [vmem:[%s958 + $0x4] sm:$0xf]
        %v961 = vld [vmem:[%s958 + $0x8] sm:$0xf]
        %v962 = vld [vmem:[%s958 + $0xc] sm:$0xf]
        %v967 = vunpack.c.l.b16 %v959
        %v968 = vunpack.c.l.b16 %v960
        %v969 = vunpack.c.l.b16 %v961
        %v970 = vunpack.c.l.b16 %v962
        %v971 = vpack.c.b16 %v968, %v967
        %v972 = vpack.c.b16 %v970, %v969
        %975 = vmatpush.bf16.msra.mxu0 0
        %976 = vmatpush.bf16.msra.mxu0 0
        %977 = vmatpush.bf16.msra.mxu0 0
        %978 = vmatpush.bf16.msra.mxu0 0
        %979 = vmatpush.bf16.msra.mxu0 0
        %980 = vmatpush.bf16.msra.mxu0 0
        %981 = vmatpush.bf16.msra.mxu0 %v972
        %982 = vmatpush.bf16.msra.mxu0 %v971
        %983 = vmatmul.bf16.gmra.mxu0 %v797
        %v984 = vpop.f32.mrf.mxu0
        %v985 = vadd.f32 0.0, %v984
        %v986 = vpop.f32.mrf.mxu0
        %987 = vdwg.mxu0
        %s988 = scalar_lea.vmem %s678, 16
        %v989 = vld [vmem:[%s988] sm:$0xf]
        %v990 = vld [vmem:[%s988 + $0x4] sm:$0xf]
        %v991 = vld [vmem:[%s988 + $0x8] sm:$0xf]
        %v992 = vld [vmem:[%s988 + $0xc] sm:$0xf]
        %v997 = vunpack.c.l.b16 %v989
        %v998 = vunpack.c.l.b16 %v990
        %v999 = vunpack.c.l.b16 %v991
        %v1000 = vunpack.c.l.b16 %v992
        %v1001 = vpack.c.b16 %v998, %v997
        %v1002 = vpack.c.b16 %v1000, %v999
        %1005 = vmatpush.bf16.msra.mxu0 0
        %1006 = vmatpush.bf16.msra.mxu0 0
        %1007 = vmatpush.bf16.msra.mxu0 0
        %1008 = vmatpush.bf16.msra.mxu0 0
        %1009 = vmatpush.bf16.msra.mxu0 0
        %1010 = vmatpush.bf16.msra.mxu0 0
        %1011 = vmatpush.bf16.msra.mxu0 %v1002
        %1012 = vmatpush.bf16.msra.mxu0 %v1001
        %1013 = vmatmul.bf16.gmra.mxu0 %v797
        %v1014 = vpop.f32.mrf.mxu0
        %v1015 = vadd.f32 0.0, %v1014
        %v1016 = vpop.f32.mrf.mxu0
        %1017 = vdwg.mxu0
        %v1018 = vpack.c.bf16 %v955, %v955
        %v1019 = vpack.c.bf16 %v985, %v985
        %v1021 = vsel %vm872, %v1018, 0
        %v1024 = vsel %vm872, %v1019, 0
        %1026 = vmatpush.bf16.xpose.msra.mxu0 0
        %1027 = vmatpush.bf16.xpose.msra.mxu0 0
        %1028 = vmatpush.bf16.xpose.msra.mxu0 0
        %1029 = vmatpush.bf16.xpose.msra.mxu0 0
        %1030 = vmatpush.bf16.xpose.msra.mxu0 0
        %1031 = vmatpush.bf16.xpose.msra.mxu0 0
        %1032 = vmatpush.bf16.xpose.msra.mxu0 0
        %1033 = vmatpush.bf16.xpose.msra.mxu0 %v1024
        %1034 = vmatmul.bf16.gmra.mxu0 %v1021
        %v1035 = vpop.f32.mrf.mxu0
        %v1036 = vadd.f32 0.0, %v1035
        %v1037 = vpop.f32.mrf.mxu0
        %1038 = vdwg.mxu0
        %v1039 = vmul.f32 %v1036, 0.35355338
        %v1040 = vsel %vm872, %v1039, -inf
        %1041 = vmax.xlane.f32.xlu0 %v1040
        %v1042 = vpop.xlane.xlu0 %1041
        %v1043 = vsub.f32 %v1039, %v1042
        %v1044 = vmul.f32 %v1043, 1.442695
        %v1045 = vpow.pop %v1044
        %v1046 = vsel %vm872, %v1045, 0.0
        %1047 = vadd.xlane.f32.xlu0 %v1046
        %v1048 = vpop.xlane.xlu0 %1047
        %v1049 = vrcp.pop %v1048
        %v1050 = vmul.f32 %v1045, %v1049
        %v1051 = vpack.c.bf16 %v1050, %v1050
        %v1052 = vpack.c.bf16 %v1015, %v1015
        %v1054 = vsel %vm872, %v1051, 0
        %v1057 = vsel %vm909, %v1052, 0
        %1059 = vmatpush.bf16.msra.mxu0 0
        %1060 = vmatpush.bf16.msra.mxu0 0
        %1061 = vmatpush.bf16.msra.mxu0 0
        %1062 = vmatpush.bf16.msra.mxu0 0
        %1063 = vmatpush.bf16.msra.mxu0 0
        %1064 = vmatpush.bf16.msra.mxu0 0
        %1065 = vmatpush.bf16.msra.mxu0 0
        %1066 = vmatpush.bf16.msra.mxu0 %v1057
        %1067 = vmatmul.bf16.gmra.mxu0 %v1054
        %v1068 = vpop.f32.mrf.mxu0
        %v1069 = vadd.f32 0.0, %v1068
        %v1070 = vpop.f32.mrf.mxu0
        %1071 = vdwg.mxu0
        %v1072 = vpack.c.bf16 %v1069, %v1069
        %s1073 = scalar_lea.vmem %s683, 4
        %v1074 = vld [vmem:[%s1073] sm:$0xf]
        %v1076 = vsel %vm872, %v1072, 0
        %v1079 = vsel %vm909, %v1074, 0
        %1081 = vmatpush.bf16.msra.mxu0 0
        %1082 = vmatpush.bf16.msra.mxu0 0
        %1083 = vmatpush.bf16.msra.mxu0 0
        %1084 = vmatpush.bf16.msra.mxu0 0
        %1085 = vmatpush.bf16.msra.mxu0 0
        %1086 = vmatpush.bf16.msra.mxu0 0
        %1087 = vmatpush.bf16.msra.mxu0 0
        %1088 = vmatpush.bf16.msra.mxu0 %v1079
        %1089 = vmatmul.bf16.gmra.mxu0 %v1076
        %v1090 = vpop.f32.mrf.mxu0
        %v1091 = vadd.f32 0.0, %v1090
        %v1092 = vpop.f32.mrf.mxu0
        %1093 = vdwg.mxu0
        %v1095 = vsel %vm872, %v926, 0
        %v1098 = vsel %vm909, %v927, 0
        %1100 = vmatpush.bf16.msra.mxu0 0
        %1101 = vmatpush.bf16.msra.mxu0 0
        %1102 = vmatpush.bf16.msra.mxu0 0
        %1103 = vmatpush.bf16.msra.mxu0 0
        %1104 = vmatpush.bf16.msra.mxu0 0
        %1105 = vmatpush.bf16.msra.mxu0 0
        %1106 = vmatpush.bf16.msra.mxu0 0
        %1107 = vmatpush.bf16.msra.mxu0 %v1098
        %1108 = vmatmul.bf16.gmra.mxu0 %v1095
        %v1109 = vpop.f32.mrf.mxu0
        %v1110 = vadd.f32 %v1091, %v1109
        %v1111 = vpop.f32.mrf.mxu0
        %1112 = vdwg.mxu0
        %s1113 = scalar_lea.vmem %s668, 32
        %v1114 = vld [vmem:[%s1113] sm:$0xf]
        %v1115 = vld [vmem:[%s1113 + $0x4] sm:$0xf]
        %v1116 = vld [vmem:[%s1113 + $0x8] sm:$0xf]
        %v1117 = vld [vmem:[%s1113 + $0xc] sm:$0xf]
        %v1122 = vunpack.c.l.b16 %v1114
        %v1123 = vunpack.c.l.b16 %v1115
        %v1124 = vunpack.c.l.b16 %v1116
        %v1125 = vunpack.c.l.b16 %v1117
        %v1126 = vpack.c.b16 %v1123, %v1122
        %v1127 = vpack.c.b16 %v1125, %v1124
        %1130 = vmatpush.bf16.msra.mxu0 0
        %1131 = vmatpush.bf16.msra.mxu0 0
        %1132 = vmatpush.bf16.msra.mxu0 0
        %1133 = vmatpush.bf16.msra.mxu0 0
        %1134 = vmatpush.bf16.msra.mxu0 0
        %1135 = vmatpush.bf16.msra.mxu0 0
        %1136 = vmatpush.bf16.msra.mxu0 %v1127
        %1137 = vmatpush.bf16.msra.mxu0 %v1126
        %1138 = vmatmul.bf16.gmra.mxu0 %v797
        %v1139 = vpop.f32.mrf.mxu0
        %v1140 = vadd.f32 0.0, %v1139
        %v1141 = vpop.f32.mrf.mxu0
        %1142 = vdwg.mxu0
        %s1143 = scalar_lea.vmem %s673, 32
        %v1144 = vld [vmem:[%s1143] sm:$0xf]
        %v1145 = vld [vmem:[%s1143 + $0x4] sm:$0xf]
        %v1146 = vld [vmem:[%s1143 + $0x8] sm:$0xf]
        %v1147 = vld [vmem:[%s1143 + $0xc] sm:$0xf]
        %v1152 = vunpack.c.l.b16 %v1144
        %v1153 = vunpack.c.l.b16 %v1145
        %v1154 = vunpack.c.l.b16 %v1146
        %v1155 = vunpack.c.l.b16 %v1147
        %v1156 = vpack.c.b16 %v1153, %v1152
        %v1157 = vpack.c.b16 %v1155, %v1154
        %1160 = vmatpush.bf16.msra.mxu0 0
        %1161 = vmatpush.bf16.msra.mxu0 0
        %1162 = vmatpush.bf16.msra.mxu0 0
        %1163 = vmatpush.bf16.msra.mxu0 0
        %1164 = vmatpush.bf16.msra.mxu0 0
        %1165 = vmatpush.bf16.msra.mxu0 0
        %1166 = vmatpush.bf16.msra.mxu0 %v1157
        %1167 = vmatpush.bf16.msra.mxu0 %v1156
        %1168 = vmatmul.bf16.gmra.mxu0 %v797
        %v1169 = vpop.f32.mrf.mxu0
        %v1170 = vadd.f32 0.0, %v1169
        %v1171 = vpop.f32.mrf.mxu0
        %1172 = vdwg.mxu0
        %s1173 = scalar_lea.vmem %s678, 32
        %v1174 = vld [vmem:[%s1173] sm:$0xf]
        %v1175 = vld [vmem:[%s1173 + $0x4] sm:$0xf]
        %v1176 = vld [vmem:[%s1173 + $0x8] sm:$0xf]
        %v1177 = vld [vmem:[%s1173 + $0xc] sm:$0xf]
        %v1182 = vunpack.c.l.b16 %v1174
        %v1183 = vunpack.c.l.b16 %v1175
        %v1184 = vunpack.c.l.b16 %v1176
        %v1185 = vunpack.c.l.b16 %v1177
        %v1186 = vpack.c.b16 %v1183, %v1182
        %v1187 = vpack.c.b16 %v1185, %v1184
        %1190 = vmatpush.bf16.msra.mxu0 0
        %1191 = vmatpush.bf16.msra.mxu0 0
        %1192 = vmatpush.bf16.msra.mxu0 0
        %1193 = vmatpush.bf16.msra.mxu0 0
        %1194 = vmatpush.bf16.msra.mxu0 0
        %1195 = vmatpush.bf16.msra.mxu0 0
        %1196 = vmatpush.bf16.msra.mxu0 %v1187
        %1197 = vmatpush.bf16.msra.mxu0 %v1186
        %1198 = vmatmul.bf16.gmra.mxu0 %v797
        %v1199 = vpop.f32.mrf.mxu0
        %v1200 = vadd.f32 0.0, %v1199
        %v1201 = vpop.f32.mrf.mxu0
        %1202 = vdwg.mxu0
        %v1203 = vpack.c.bf16 %v1140, %v1140
        %v1204 = vpack.c.bf16 %v1170, %v1170
        %v1206 = vsel %vm872, %v1203, 0
        %v1209 = vsel %vm872, %v1204, 0
        %1211 = vmatpush.bf16.xpose.msra.mxu0 0
        %1212 = vmatpush.bf16.xpose.msra.mxu0 0
        %1213 = vmatpush.bf16.xpose.msra.mxu0 0
        %1214 = vmatpush.bf16.xpose.msra.mxu0 0
        %1215 = vmatpush.bf16.xpose.msra.mxu0 0
        %1216 = vmatpush.bf16.xpose.msra.mxu0 0
        %1217 = vmatpush.bf16.xpose.msra.mxu0 0
        %1218 = vmatpush.bf16.xpose.msra.mxu0 %v1209
        %1219 = vmatmul.bf16.gmra.mxu0 %v1206
        %v1220 = vpop.f32.mrf.mxu0
        %v1221 = vadd.f32 0.0, %v1220
        %v1222 = vpop.f32.mrf.mxu0
        %1223 = vdwg.mxu0
        %v1224 = vmul.f32 %v1221, 0.35355338
        %v1225 = vsel %vm872, %v1224, -inf
        %1226 = vmax.xlane.f32.xlu0 %v1225
        %v1227 = vpop.xlane.xlu0 %1226
        %v1228 = vsub.f32 %v1224, %v1227
        %v1229 = vmul.f32 %v1228, 1.442695
        %v1230 = vpow.pop %v1229
        %v1231 = vsel %vm872, %v1230, 0.0
        %1232 = vadd.xlane.f32.xlu0 %v1231
        %v1233 = vpop.xlane.xlu0 %1232
        %v1234 = vrcp.pop %v1233
        %v1235 = vmul.f32 %v1230, %v1234
        %v1236 = vpack.c.bf16 %v1235, %v1235
        %v1237 = vpack.c.bf16 %v1200, %v1200
        %v1239 = vsel %vm872, %v1236, 0
        %v1242 = vsel %vm909, %v1237, 0
        %1244 = vmatpush.bf16.msra.mxu0 0
        %1245 = vmatpush.bf16.msra.mxu0 0
        %1246 = vmatpush.bf16.msra.mxu0 0
        %1247 = vmatpush.bf16.msra.mxu0 0
        %1248 = vmatpush.bf16.msra.mxu0 0
        %1249 = vmatpush.bf16.msra.mxu0 0
        %1250 = vmatpush.bf16.msra.mxu0 0
        %1251 = vmatpush.bf16.msra.mxu0 %v1242
        %1252 = vmatmul.bf16.gmra.mxu0 %v1239
        %v1253 = vpop.f32.mrf.mxu0
        %v1254 = vadd.f32 0.0, %v1253
        %v1255 = vpop.f32.mrf.mxu0
        %1256 = vdwg.mxu0
        %v1257 = vpack.c.bf16 %v1254, %v1254
        %s1258 = scalar_lea.vmem %s683, 8
        %v1259 = vld [vmem:[%s1258] sm:$0xf]
        %v1261 = vsel %vm872, %v1257, 0
        %v1264 = vsel %vm909, %v1259, 0
        %1266 = vmatpush.bf16.msra.mxu0 0
        %1267 = vmatpush.bf16.msra.mxu0 0
        %1268 = vmatpush.bf16.msra.mxu0 0
        %1269 = vmatpush.bf16.msra.mxu0 0
        %1270 = vmatpush.bf16.msra.mxu0 0
        %1271 = vmatpush.bf16.msra.mxu0 0
        %1272 = vmatpush.bf16.msra.mxu0 0
        %1273 = vmatpush.bf16.msra.mxu0 %v1264
        %1274 = vmatmul.bf16.gmra.mxu0 %v1261
        %v1275 = vpop.f32.mrf.mxu0
        %v1276 = vadd.f32 0.0, %v1275
        %v1277 = vpop.f32.mrf.mxu0
        %1278 = vdwg.mxu0
        %v1279 = vadd.f32 %v1110, %v1276
        %s1280 = scalar_lea.vmem %s668, 48
        %v1281 = vld [vmem:[%s1280] sm:$0xf]
        %v1282 = vld [vmem:[%s1280 + $0x4] sm:$0xf]
        %v1283 = vld [vmem:[%s1280 + $0x8] sm:$0xf]
        %v1284 = vld [vmem:[%s1280 + $0xc] sm:$0xf]
        %v1289 = vunpack.c.l.b16 %v1281
        %v1290 = vunpack.c.l.b16 %v1282
        %v1291 = vunpack.c.l.b16 %v1283
        %v1292 = vunpack.c.l.b16 %v1284
        %v1293 = vpack.c.b16 %v1290, %v1289
        %v1294 = vpack.c.b16 %v1292, %v1291
        %1297 = vmatpush.bf16.msra.mxu0 0
        %1298 = vmatpush.bf16.msra.mxu0 0
        %1299 = vmatpush.bf16.msra.mxu0 0
        %1300 = vmatpush.bf16.msra.mxu0 0
        %1301 = vmatpush.bf16.msra.mxu0 0
        %1302 = vmatpush.bf16.msra.mxu0 0
        %1303 = vmatpush.bf16.msra.mxu0 %v1294
        %1304 = vmatpush.bf16.msra.mxu0 %v1293
        %1305 = vmatmul.bf16.gmra.mxu0 %v797
        %v1306 = vpop.f32.mrf.mxu0
        %v1307 = vadd.f32 0.0, %v1306
        %v1308 = vpop.f32.mrf.mxu0
        %1309 = vdwg.mxu0
        %s1310 = scalar_lea.vmem %s673, 48
        %v1311 = vld [vmem:[%s1310] sm:$0xf]
        %v1312 = vld [vmem:[%s1310 + $0x4] sm:$0xf]
        %v1313 = vld [vmem:[%s1310 + $0x8] sm:$0xf]
        %v1314 = vld [vmem:[%s1310 + $0xc] sm:$0xf]
        %v1319 = vunpack.c.l.b16 %v1311
        %v1320 = vunpack.c.l.b16 %v1312
        %v1321 = vunpack.c.l.b16 %v1313
        %v1322 = vunpack.c.l.b16 %v1314
        %v1323 = vpack.c.b16 %v1320, %v1319
        %v1324 = vpack.c.b16 %v1322, %v1321
        %1327 = vmatpush.bf16.msra.mxu0 0
        %1328 = vmatpush.bf16.msra.mxu0 0
        %1329 = vmatpush.bf16.msra.mxu0 0
        %1330 = vmatpush.bf16.msra.mxu0 0
        %1331 = vmatpush.bf16.msra.mxu0 0
        %1332 = vmatpush.bf16.msra.mxu0 0
        %1333 = vmatpush.bf16.msra.mxu0 %v1324
        %1334 = vmatpush.bf16.msra.mxu0 %v1323
        %1335 = vmatmul.bf16.gmra.mxu0 %v797
        %v1336 = vpop.f32.mrf.mxu0
        %v1337 = vadd.f32 0.0, %v1336
        %v1338 = vpop.f32.mrf.mxu0
        %1339 = vdwg.mxu0
        %s1340 = scalar_lea.vmem %s678, 48
        %v1341 = vld [vmem:[%s1340] sm:$0xf]
        %v1342 = vld [vmem:[%s1340 + $0x4] sm:$0xf]
        %v1343 = vld [vmem:[%s1340 + $0x8] sm:$0xf]
        %v1344 = vld [vmem:[%s1340 + $0xc] sm:$0xf]
        %v1349 = vunpack.c.l.b16 %v1341
        %v1350 = vunpack.c.l.b16 %v1342
        %v1351 = vunpack.c.l.b16 %v1343
        %v1352 = vunpack.c.l.b16 %v1344
        %v1353 = vpack.c.b16 %v1350, %v1349
        %v1354 = vpack.c.b16 %v1352, %v1351
        %1357 = vmatpush.bf16.msra.mxu0 0
        %1358 = vmatpush.bf16.msra.mxu0 0
        %1359 = vmatpush.bf16.msra.mxu0 0
        %1360 = vmatpush.bf16.msra.mxu0 0
        %1361 = vmatpush.bf16.msra.mxu0 0
        %1362 = vmatpush.bf16.msra.mxu0 0
        %1363 = vmatpush.bf16.msra.mxu0 %v1354
        %1364 = vmatpush.bf16.msra.mxu0 %v1353
        %1365 = vmatmul.bf16.gmra.mxu0 %v797
        %v1366 = vpop.f32.mrf.mxu0
        %v1367 = vadd.f32 0.0, %v1366
        %v1368 = vpop.f32.mrf.mxu0
        %1369 = vdwg.mxu0
        %v1370 = vpack.c.bf16 %v1307, %v1307
        %v1371 = vpack.c.bf16 %v1337, %v1337
        %v1373 = vsel %vm872, %v1370, 0
        %v1376 = vsel %vm872, %v1371, 0
        %1378 = vmatpush.bf16.xpose.msra.mxu0 0
        %1379 = vmatpush.bf16.xpose.msra.mxu0 0
        %1380 = vmatpush.bf16.xpose.msra.mxu0 0
        %1381 = vmatpush.bf16.xpose.msra.mxu0 0
        %1382 = vmatpush.bf16.xpose.msra.mxu0 0
        %1383 = vmatpush.bf16.xpose.msra.mxu0 0
        %1384 = vmatpush.bf16.xpose.msra.mxu0 0
        %1385 = vmatpush.bf16.xpose.msra.mxu0 %v1376
        %1386 = vmatmul.bf16.gmra.mxu0 %v1373
        %v1387 = vpop.f32.mrf.mxu0
        %v1388 = vadd.f32 0.0, %v1387
        %v1389 = vpop.f32.mrf.mxu0
        %1390 = vdwg.mxu0
        %v1391 = vmul.f32 %v1388, 0.35355338
        %v1392 = vsel %vm872, %v1391, -inf
        %1393 = vmax.xlane.f32.xlu0 %v1392
        %v1394 = vpop.xlane.xlu0 %1393
        %v1395 = vsub.f32 %v1391, %v1394
        %v1396 = vmul.f32 %v1395, 1.442695
        %v1397 = vpow.pop %v1396
        %v1398 = vsel %vm872, %v1397, 0.0
        %1399 = vadd.xlane.f32.xlu0 %v1398
        %v1400 = vpop.xlane.xlu0 %1399
        %v1401 = vrcp.pop %v1400
        %v1402 = vmul.f32 %v1397, %v1401
        %v1403 = vpack.c.bf16 %v1402, %v1402
        %v1404 = vpack.c.bf16 %v1367, %v1367
        %v1406 = vsel %vm872, %v1403, 0
        %v1409 = vsel %vm909, %v1404, 0
        %1411 = vmatpush.bf16.msra.mxu0 0
        %1412 = vmatpush.bf16.msra.mxu0 0
        %1413 = vmatpush.bf16.msra.mxu0 0
        %1414 = vmatpush.bf16.msra.mxu0 0
        %1415 = vmatpush.bf16.msra.mxu0 0
        %1416 = vmatpush.bf16.msra.mxu0 0
        %1417 = vmatpush.bf16.msra.mxu0 0
        %1418 = vmatpush.bf16.msra.mxu0 %v1409
        %1419 = vmatmul.bf16.gmra.mxu0 %v1406
        %v1420 = vpop.f32.mrf.mxu0
        %v1421 = vadd.f32 0.0, %v1420
        %v1422 = vpop.f32.mrf.mxu0
        %1423 = vdwg.mxu0
        %v1424 = vpack.c.bf16 %v1421, %v1421
        %s1425 = scalar_lea.vmem %s683, 12
        %v1426 = vld [vmem:[%s1425] sm:$0xf]
        %v1428 = vsel %vm872, %v1424, 0
        %v1431 = vsel %vm909, %v1426, 0
        %1433 = vmatpush.bf16.msra.mxu0 0
        %1434 = vmatpush.bf16.msra.mxu0 0
        %1435 = vmatpush.bf16.msra.mxu0 0
        %1436 = vmatpush.bf16.msra.mxu0 0
        %1437 = vmatpush.bf16.msra.mxu0 0
        %1438 = vmatpush.bf16.msra.mxu0 0
        %1439 = vmatpush.bf16.msra.mxu0 0
        %1440 = vmatpush.bf16.msra.mxu0 %v1431
        %1441 = vmatmul.bf16.gmra.mxu0 %v1428
        %v1442 = vpop.f32.mrf.mxu0
        %v1443 = vadd.f32 0.0, %v1442
        %v1444 = vpop.f32.mrf.mxu0
        %1445 = vdwg.mxu0
        %v1446 = vadd.f32 %v1279, %v1443
        %v1447 = vadd.f32 %v740, %v1446
        %v1448 = vld [vmem:[%s686] sm:$0x1]
        %v1449 = vld [vmem:[%s689] sm:$0x1]
        %v1450 = vsel %vm743, %v1447, 0.0
        %1451 = vadd.xlane.f32.xlu0 %v1450
        %v1452 = vpop.xlane.xlu0 %1451
        %v1453 = vmul.f32 %v1452, %v753
        %v1454 = vsub.f32 %v1447, %v1453
        %v1455 = vmul.f32 %v1454, %v1454
        %v1456 = vsel %vm743, %v1455, 0.0
        %1457 = vadd.xlane.f32.xlu0 %v1456
        %v1458 = vpop.xlane.xlu0 %1457
        %v1459 = vmul.f32 %v1458, %v753
        %v1460 = vadd.f32 %v1459, 1e-05
        %v1461 = vrsqrt.pop %v1460
        %v1462 = vmul.f32 %v1461, %v1460
        %v1463 = vmul.f32 %v1462, %v1461
        %v1464 = vmul.f32 0.5, %v1463
        %v1465 = vsub.f32 1.5, %v1464
        %v1466 = vmul.f32 %v1461, %v1465
        %vm1467 = vweird.f32 %v1460
        %vm1468 = vweird.f32 %v1461
        %vm1469 = vmor %vm1467, %vm1468
        %v1470 = vsel %vm1469, %v1461, %v1466
        %v1471 = vmul.f32 %v1454, %v1470
        %v1472 = vunpack.c.l.bf16 %v1448
        %v1473 = vperm.slane %v1472, 0
        %v1474 = vmul.f32 %v1471, %v1473
        %v1475 = vunpack.c.l.bf16 %v1449
        %v1476 = vperm.slane %v1475, 0
        %v1477 = vadd.f32 %v1474, %v1476
        %v1478 = vpack.c.bf16 %v1477, %v1477
        %v1479 = vld [vmem:[%s694] sm:$0xf]
        %v1480 = vld [vmem:[%s694 + $0x4] sm:$0xf]
        %v1481 = vld [vmem:[%s694 + $0x8] sm:$0xf]
        %v1482 = vld [vmem:[%s694 + $0xc] sm:$0xf]
        %v1483 = vld [vmem:[%s697] sm:$0x1]
        %v1484 = vunpack.c.l.bf16 %v1483
        %v1485 = vperm.slane %v1484, 0
        %v1490 = vunpack.c.l.b16 %v1479
        %v1491 = vunpack.c.l.b16 %v1480
        %v1492 = vunpack.c.l.b16 %v1481
        %v1493 = vunpack.c.l.b16 %v1482
        %v1494 = vpack.c.b16 %v1491, %v1490
        %v1495 = vpack.c.b16 %v1493, %v1492
        %v1499 = vsel %vm743, %v1478, 0
        %1501 = vmatpush.bf16.msra.mxu0 0
        %1502 = vmatpush.bf16.msra.mxu0 0
        %1503 = vmatpush.bf16.msra.mxu0 0
        %1504 = vmatpush.bf16.msra.mxu0 0
        %1505 = vmatpush.bf16.msra.mxu0 0
        %1506 = vmatpush.bf16.msra.mxu0 0
        %1507 = vmatpush.bf16.msra.mxu0 %v1495
        %1508 = vmatpush.bf16.msra.mxu0 %v1494
        %1509 = vmatmul.bf16.gmra.mxu0 %v1499
        %v1510 = vpop.f32.mrf.mxu0
        %v1511 = vadd.f32 %v1485, %v1510
        %v1512 = vpop.f32.mrf.mxu0
        %1513 = vdwg.mxu0
        %1514 = vmax.xlane.f32.xlu0 %v1511
        %v1515 = vpop.xlane.xlu0 %1514
        %v1516 = vsub.f32 %v1511, %v1515
        %v1517 = vmul.f32 %v1516, 1.442695
        %v1518 = vpow.pop %v1517
        %1519 = vadd.xlane.f32.xlu0 %v1518
        %v1520 = vpop.xlane.xlu0 %1519
        %v1521 = vrcp.pop %v1520
        %v1522 = vmul.f32 %v1518, %v1521
        %v1523 = vpack.c.bf16 %v1522, %v1522
        %v1524 = vld [vmem:[%s702] sm:$0xf]
        %v1525 = vld [vmem:[%s702 + $0x4] sm:$0xf]
        %v1526 = vld [vmem:[%s702 + $0x8] sm:$0xf]
        %v1527 = vld [vmem:[%s702 + $0xc] sm:$0xf]
        %v1528 = vld [vmem:[%s702 + $0x10] sm:$0xf]
        %v1529 = vld [vmem:[%s702 + $0x14] sm:$0xf]
        %v1530 = vld [vmem:[%s702 + $0x18] sm:$0xf]
        %v1531 = vld [vmem:[%s702 + $0x1c] sm:$0xf]
        %v1532 = vld [vmem:[%s702 + $0x20] sm:$0xf]
        %v1533 = vld [vmem:[%s702 + $0x24] sm:$0xf]
        %v1534 = vld [vmem:[%s702 + $0x28] sm:$0xf]
        %v1535 = vld [vmem:[%s702 + $0x2c] sm:$0xf]
        %v1536 = vld [vmem:[%s702 + $0x30] sm:$0xf]
        %v1537 = vld [vmem:[%s702 + $0x34] sm:$0xf]
        %v1538 = vld [vmem:[%s702 + $0x38] sm:$0xf]
        %v1539 = vld [vmem:[%s702 + $0x3c] sm:$0xf]
        %v1540 = vld [vmem:[%s705] sm:$0x1]
        %v1541 = vunpack.c.l.bf16 %v1540
        %v1542 = vperm.slane %v1541, 0
        %v1559 = vunpack.c.l.b16 %v1524
        %v1560 = vunpack.c.l.b16 %v1525
        %v1561 = vunpack.c.l.b16 %v1526
        %v1562 = vunpack.c.l.b16 %v1527
        %v1563 = vunpack.c.l.b16 %v1528
        %v1564 = vunpack.c.l.b16 %v1529
        %v1565 = vunpack.c.l.b16 %v1530
        %v1566 = vunpack.c.l.b16 %v1531
        %v1567 = vunpack.c.l.b16 %v1532
        %v1568 = vunpack.c.l.b16 %v1533
        %v1569 = vunpack.c.l.b16 %v1534
        %v1570 = vunpack.c.l.b16 %v1535
        %v1571 = vunpack.c.l.b16 %v1536
        %v1572 = vunpack.c.l.b16 %v1537
        %v1573 = vunpack.c.l.b16 %v1538
        %v1574 = vunpack.c.l.b16 %v1539
        %v1575 = vpack.c.b16 %v1560, %v1559
        %v1576 = vpack.c.b16 %v1562, %v1561
        %v1577 = vpack.c.b16 %v1564, %v1563
        %v1578 = vpack.c.b16 %v1566, %v1565
        %v1579 = vpack.c.b16 %v1568, %v1567
        %v1580 = vpack.c.b16 %v1570, %v1569
        %v1581 = vpack.c.b16 %v1572, %v1571
        %v1582 = vpack.c.b16 %v1574, %v1573
        %1591 = vmatpush.bf16.msra.mxu0 %v1582
        %1592 = vmatpush.bf16.msra.mxu0 %v1581
        %1593 = vmatpush.bf16.msra.mxu0 %v1580
        %1594 = vmatpush.bf16.msra.mxu0 %v1579
        %1595 = vmatpush.bf16.msra.mxu0 %v1578
        %1596 = vmatpush.bf16.msra.mxu0 %v1577
        %1597 = vmatpush.bf16.msra.mxu0 %v1576
        %1598 = vmatpush.bf16.msra.mxu0 %v1575
        %1599 = vmatmul.bf16.gmra.mxu0 %v1523
        %v1600 = vpop.f32.mrf.mxu0
        %v1601 = vadd.f32 %v1542, %v1600
        %v1602 = vpop.f32.mrf.mxu0
        %1603 = vdwg.mxu0
        %v1604 = vadd.f32 %v1447, %v1601
        %1605 = vst.msk [vmem:[#allocation2] sm:$0xff] %vm743, %v1604
        %p1606 = scmp.eq.s32.totalorder %s34, 1
        // Predicated region
        $region85: #{tpu_custom_call.1} parent=79 // pred_check
          %p1607 = pneg %p1606
        $region86: #{tpu_custom_call.1} parent=79 // pred_check_branch
          %1609 = sbr.rel (%p1607) target = $region88
        $region87: #{tpu_custom_call.1} parent=79 // pred_region
          %v1610 = vpack.c.bf16 %v1604, %v1604
          %v1611 = vld [vmem:[%s14] sm:$0xf]
          %v1612 = vld [vmem:[%s14 + $0x4] sm:$0xf]
          %v1613 = vld [vmem:[%s14 + $0x8] sm:$0xf]
          %v1614 = vld [vmem:[%s14 + $0xc] sm:$0xf]
          %v1619 = vunpack.c.l.b16 %v1611
          %v1620 = vunpack.c.l.b16 %v1612
          %v1621 = vunpack.c.l.b16 %v1613
          %v1622 = vunpack.c.l.b16 %v1614
          %v1623 = vpack.c.b16 %v1620, %v1619
          %v1624 = vpack.c.b16 %v1622, %v1621
          %v1628 = vsel %vm743, %v1610, 0
          %1630 = vmatpush.bf16.msra.mxu0 0
          %1631 = vmatpush.bf16.msra.mxu0 0
          %1632 = vmatpush.bf16.msra.mxu0 0
          %1633 = vmatpush.bf16.msra.mxu0 0
          %1634 = vmatpush.bf16.msra.mxu0 0
          %1635 = vmatpush.bf16.msra.mxu0 0
          %1636 = vmatpush.bf16.msra.mxu0 %v1624
          %1637 = vmatpush.bf16.msra.mxu0 %v1623
          %1638 = vmatmul.bf16.gmra.mxu0 %v1628
          %v1639 = vpop.f32.mrf.mxu0
          %v1640 = vadd.f32 0.0, %v1639
          %v1641 = vpop.f32.mrf.mxu0
          %1642 = vdwg.mxu0
          %vm1643 = vcmask 130048
          %1644 = vst.msk [vmem:[%s653] sm:$0xff] %vm1643, %v1640
        $region88: #{tpu_custom_call.1} parent=79 // pred_fallthru
          _
        %s1645 = sand.u32 %s429, 1
        %s1646 = scalar_lea.sflag [#allocation4], %s1645
        %s1647 = sand.u32 %s429, 1
        %s1648 = smul.addr %s1647, 8
        %s1649 = scalar_lea.vmem [#allocation3], %s1648
        // Predicated region
        $region89: #{tpu_custom_call.1} parent=79 // pred_check
          %p1650 = pneg %p439
        $region90: #{tpu_custom_call.1} parent=79 // pred_check_branch
          %1652 = sbr.rel (%p1650) target = $region92
        $region91: #{tpu_custom_call.1} parent=79 // pred_region
          %1654 = vsyncadd %s1646, 0
          %s1655 = smul.addr %s33, 8
          %s1656 = scalar_lea.hbm %s15, %s1655
          %s1658 = sshll.u32 %s1649, 4
          %s1659 = int_to_ptr.vmem [resolvable:$true] %s1658
          %s1660 = sshll.u32 %s1656, 4
          %s1661 = int_to_ptr.hbm [resolvable:$true] %s1660
          %1663 = dma.vmem_to_hbm [thread:$0]  %s1659, 128, %s1661, %s1646
        $region92: #{tpu_custom_call.1} parent=79 // pred_fallthru
          _
      $region80: #{tpu_custom_call.1} parent=5 // pred_fallthru
        _
      %p1664 = scmp.le.s32.totalorder 2, %s24
      // Predicated region
      $region93: #{tpu_custom_call.1} parent=5 // pred_check
        %p1665 = pneg %p1664
      $region94: #{tpu_custom_call.1} parent=5 // pred_check_branch
        %1667 = sbr.rel (%p1665) target = $region96
      $region95: #{tpu_custom_call.1} parent=5 // pred_region
        %s1668 = ssub.s32 %s24, 2
        // Predicated region
        $region97: #{tpu_custom_call.1} parent=95 // pred_check
          %p1669 = pneg %p445
        $region98: #{tpu_custom_call.1} parent=95 // pred_check_branch
          %1671 = sbr.rel (%p1669) target = $region100
        $region99: #{tpu_custom_call.1} parent=95 // pred_region
          %s1672 = sand.u32 %s430, 1
          %s1673 = scalar_lea.sflag [#allocation4], %s1672
          %s1674 = sand.u32 %s430, 1
          %s1675 = smul.addr %s1674, 8
          %s1676 = scalar_lea.vmem [#allocation3], %s1675
          %1678 = dma.done %s1673, 128
        $region100: #{tpu_custom_call.1} parent=95 // pred_fallthru
          _
      $region96: #{tpu_custom_call.1} parent=5 // pred_fallthru
        _
    $region6: #{tpu_custom_call.1} parent=1 // loop_footer
      %s28 = sadd.s32 1, %s24
    $region7: #{tpu_custom_call.1} parent=1 // loop_footer_branch
      %23 = sbr.rel target = $region3
    $region8: #{tpu_custom_call.1} parent=1 // loop_exit
      _
    %1679 = vsyncpa [#allocation4], 1
    %s1680 = scalar_lea.sflag [#allocation4], 1
    %1681 = vsyncpa %s1680, 1

</llo_original>
